<compile_context>
chip_gen: v5e
topology: v5e:2x2
jax: 0.10.0
libtpu: 0.0.40
codegen_flags: <defaults>
</compile_context>

<pallas_src>
import jax
import jax.numpy as jnp
from jax.experimental import pallas as pl
from jax.experimental.pallas import tpu as pltpu


_FCP = 128   # fc_shared output width padded to a full 128-lane tile
_HDP = 128   # fused actor|critic head width padded to a full 128-lane tile


# -----------------------------------------------------------------------------
# Kernel: one invocation, everything VMEM-resident.
# -----------------------------------------------------------------------------
def _actor_critic_kernel(
    x_ref,      # (T*Bp, D)          time-major flattened input
    hc0_ref,    # (Bp, 2H)           [h0 | c0]
    wcat_ref,   # (D+H, 4H)          stacked [W_ih^T ; W_hh^T]
    whd_ref,    # (max(H,128), 256)  [fc_shared^T (padded) | actor|critic head (padded)]
    b_ref,      # (1, 4H+128+128)    [b_lstm | b_fc(pad) | b_head(pad)]
    head_ref,   # (Bp, 128)          out: [actor | critic | 0-pad]
    hcn_ref,    # (Bp, 2H)           out: [h_n | c_n]
):
    TB, D = x_ref.shape
    Bp, twoH = hc0_ref.shape
    H = twoH // 2
    T = TB // Bp

    h = hc0_ref[:, :H]                      # (Bp, H)
    c = hc0_ref[:, H:]                      # (Bp, H)

    # Static, tile-aligned slices of the packed operands (D and H are multiples
    # of 8 sublanes; all lane offsets are multiples of 128).
    w_ih_t = wcat_ref[:D, :]                # (D, 4H)
    w_hh_t = wcat_ref[D:, :]                # (H, 4H)
    b_lstm = b_ref[:, :4 * H]               # (1, 4H)

    # Hoisted input projection: one MXU call covers all T steps; the bias add
    # is also taken off the serial recurrence.
    x_proj = jnp.dot(
        x_ref[...], w_ih_t, preferred_element_type=jnp.float32
    ) + b_lstm                               # (T*Bp, 4H)

    def sig(z):                              # sigmoid as a single EUP tanh
        return 0.5 * jnp.tanh(0.5 * z) + 0.5

    # T is small and static -> fully unrolled recurrence; per step exactly one
    # (Bp,H)x(H,4H) MXU matmul, lane-tile-aligned gate slices, no concat.
    # TODO(synk): for T beyond ~16 switch to lax.fori_loop(unroll=...) or a
    # time grid to bound live ranges; optionally bf16 W_hh / MXU weight residency.
    for t in range(T):
        gates = x_proj[t * Bp:(t + 1) * Bp, :] + jnp.dot(
            h, w_hh_t, preferred_element_type=jnp.float32
        )                                    # (Bp, 4H), gate order i,f,g,o
        i_g = sig(gates[:, 0 * H:1 * H])
        f_g = sig(gates[:, 1 * H:2 * H])
        g_g = jnp.tanh(gates[:, 2 * H:3 * H])
        o_g = sig(gates[:, 3 * H:4 * H])
        c = f_g * c + i_g * g_g
        h = o_g * jnp.tanh(c)

    hcn_ref[:, :H] = h
    hcn_ref[:, H:] = c

    # Fused epilogue: fc_shared -> ReLU -> [actor | critic], written as one
    # lane-dense (Bp, 128) tile (wrapper splits actor/critic).
    b_fc = b_ref[:, 4 * H:4 * H + _FCP]                     # (1, 128)
    b_hd = b_ref[:, 4 * H + _FCP:4 * H + _FCP + _HDP]       # (1, 128)
    shared = jnp.maximum(
        jnp.dot(h, whd_ref[:H, :_FCP], preferred_element_type=jnp.float32)
        + b_fc,
        0.0,
    )                                                        # (Bp, 128)
    head_ref[...] = jnp.dot(
        shared, whd_ref[:_FCP, _FCP:], preferred_element_type=jnp.float32
    ) + b_hd


# -----------------------------------------------------------------------------
# Wrapper
# -----------------------------------------------------------------------------
def actor_critic_forward(x, params, hx=None):
    """x: [B, T, input_size] (batch_first, like the PyTorch module)."""
    B, T, D = x.shape
    if T < 1:
        raise ValueError("sequence length must be >= 1")
    H = params["hidden_size"]
    A = params["action_dim"]

    # Pad batch to the f32 sublane multiple; padded rows are independent.
    Bp = max(8, ((B + 7) // 8) * 8)

    # Time-major flattened input so each step is a static sublane-aligned slice.
    x_tm = jnp.transpose(x.astype(jnp.float32), (1, 0, 2))   # (T, B, D)
    if Bp != B:
        x_tm = jnp.pad(x_tm, ((0, 0), (0, Bp - B), (0, 0)))
    x_tm = x_tm.reshape(T * Bp, D)

    hc0 = jnp.zeros((Bp, 2 * H), jnp.float32)
    if hx is not None:
        h_in, c_in = hx
        hc0 = hc0.at[:B, :H].set(h_in.reshape(B, H).astype(jnp.float32))
        hc0 = hc0.at[:B, H:].set(c_in.reshape(B, H).astype(jnp.float32))

    head, hcn = pl.pallas_call(
        _actor_critic_kernel,
        out_shape=(
            jax.ShapeDtypeStruct((Bp, _HDP), jnp.float32),
            jax.ShapeDtypeStruct((Bp, 2 * H), jnp.float32),
        ),
        compiler_params=pltpu.CompilerParams(
            # Explicit scoped-VMEM budget (safe on v5e/v6e/v7x; usage is <1 MiB).
            vmem_limit_bytes=32 * 1024 * 1024,
        ),
    )(x_tm, hc0, params["w_cat"], params["w_heads"], params["b_pack"])

    actor = head[:B, :A]
    critic = head[:B, A:A + 1]
    # nn.LSTM returns (h_n, c_n) with shape (num_layers=1, B, H)
    hx_out = (hcn[:B, :H].reshape(1, B, H), hcn[:B, H:].reshape(1, B, H))
    return actor, critic, hx_out


# -----------------------------------------------------------------------------
# Deterministic parameter init (matches nn.LSTM / nn.Linear shapes) + packing
# -----------------------------------------------------------------------------
def init_params(key, input_size, hidden_size=128, action_dim=3):
    D, H, A = input_size, hidden_size, action_dim
    ks = jax.random.split(key, 10)
    sH = 1.0 / (H ** 0.5)
    s64 = 1.0 / (64.0 ** 0.5)
    u = lambda k, shape, s: jax.random.uniform(k, shape, jnp.float32, -s, s)

    w_ih = u(ks[0], (4 * H, D), sH)     # lstm.weight_ih_l0
    w_hh = u(ks[1], (4 * H, H), sH)     # lstm.weight_hh_l0
    b_ih = u(ks[2], (4 * H,), sH)       # lstm.bias_ih_l0
    b_hh = u(ks[3], (4 * H,), sH)       # lstm.bias_hh_l0
    w_fc = u(ks[4], (64, H), sH)        # fc_shared.weight
    b_fc = u(ks[5], (64,), sH)
    w_a = u(ks[6], (A, 64), s64)        # actor.weight
    b_a = u(ks[7], (A,), s64)
    w_c = u(ks[8], (1, 64), s64)        # critic.weight
    b_c = u(ks[9], (1,), s64)

    # ---- packed kernel operands -------------------------------------------
    w_cat = jnp.concatenate([w_ih.T, w_hh.T], axis=0)         # (D+H, 4H)

    R = max(H, _FCP)
    w_fc_p = jnp.zeros((R, _FCP), jnp.float32).at[:H, :64].set(w_fc.T)
    w_head = jnp.concatenate([w_a.T, w_c.T], axis=1)          # (64, A+1)
    w_hd_p = jnp.zeros((R, _HDP), jnp.float32).at[:64, :A + 1].set(w_head)
    w_heads = jnp.concatenate([w_fc_p, w_hd_p], axis=1)       # (R, 256)

    b_pack = jnp.zeros((1, 4 * H + _FCP + _HDP), jnp.float32)
    b_pack = b_pack.at[0, :4 * H].set(b_ih + b_hh)
    b_pack = b_pack.at[0, 4 * H:4 * H + 64].set(b_fc)
    b_pack = b_pack.at[0, 4 * H + _FCP:4 * H + _FCP + A].set(b_a)
    b_pack = b_pack.at[0, 4 * H + _FCP + A:4 * H + _FCP + A + 1].set(b_c)

    return {
        # packed operands for the kernel
        "w_cat": w_cat, "w_heads": w_heads, "b_pack": b_pack,
        "input_size": D, "hidden_size": H, "action_dim": A,
        # raw parameters for the pure-JAX reference
        "w_ih": w_ih, "w_hh": w_hh, "b_ih": b_ih, "b_hh": b_hh,
        "w_fc": w_fc, "b_fc": b_fc, "w_a": w_a, "b_a": b_a,
        "w_c": w_c, "b_c": b_c,
    }


# -----------------------------------------------------------------------------
# Pure-JAX reference (PyTorch semantics, for correctness check)
# -----------------------------------------------------------------------------
def reference_forward(x, p, hx=None):
    B, T, D = x.shape
    H = p["hidden_size"]
    if hx is None:
        h = jnp.zeros((B, H), jnp.float32)
        c = jnp.zeros((B, H), jnp.float32)
    else:
        h = hx[0].reshape(B, H).astype(jnp.float32)
        c = hx[1].reshape(B, H).astype(jnp.float32)
    for t in range(T):
        gates = (x[:, t, :] @ p["w_ih"].T + p["b_ih"]
                 + h @ p["w_hh"].T + p["b_hh"])
        i = jax.nn.sigmoid(gates[:, :H])
        f = jax.nn.sigmoid(gates[:, H:2 * H])
        g = jnp.tanh(gates[:, 2 * H:3 * H])
        o = jax.nn.sigmoid(gates[:, 3 * H:])
        c = f * c + i * g
        h = o * jnp.tanh(c)
    sh = jnp.maximum(h @ p["w_fc"].T + p["b_fc"], 0.0)
    return sh @ p["w_a"].T + p["b_a"], sh @ p["w_c"].T + p["b_c"], (h, c)


# -----------------------------------------------------------------------------
if __name__ == "__main__":
    # Small shapes consistent with the module: batch=2, window(seq)=8,
    # input_size=16, hidden_size=128 (module default -> gate slices are full
    # 128-lane tiles), action_dim=3.
    B, T, D, H, A = 2, 8, 16, 128, 3

    key = jax.random.PRNGKey(0)
    k_param, k_x = jax.random.split(key)
    params = init_params(k_param, input_size=D, hidden_size=H, action_dim=A)
    x = jax.random.normal(k_x, (B, T, D), jnp.float32)

    # --- call 1: hx = None ---------------------------------------------------
    actor, critic, (h_n, c_n) = actor_critic_forward(x, params, hx=None)
    jax.block_until_ready((actor, critic, h_n, c_n))

    a_ref, v_ref, (h_ref, c_ref) = reference_forward(x, params, hx=None)
    assert actor.shape == (B, A) and critic.shape == (B, 1)
    assert h_n.shape == (1, B, H) and c_n.shape == (1, B, H)
    assert jnp.allclose(actor, a_ref, atol=1e-3, rtol=1e-3)
    assert jnp.allclose(critic, v_ref, atol=1e-3, rtol=1e-3)
    assert jnp.allclose(h_n[0], h_ref, atol=1e-3, rtol=1e-3)
    assert jnp.allclose(c_n[0], c_ref, atol=1e-3, rtol=1e-3)

    # --- call 2: carry hx forward (exercises the provided-hx path) ------------
    actor2, critic2, (h_n2, c_n2) = actor_critic_forward(x, params, hx=(h_n, c_n))
    jax.block_until_ready((actor2, critic2, h_n2, c_n2))
    a_ref2, v_ref2, (h_ref2, c_ref2) = reference_forward(x, params, hx=(h_ref, c_ref))
    assert jnp.allclose(actor2, a_ref2, atol=1e-3, rtol=1e-3)
    assert jnp.allclose(critic2, v_ref2, atol=1e-3, rtol=1e-3)
    assert jnp.allclose(h_n2[0], h_ref2, atol=1e-3, rtol=1e-3)
    assert jnp.allclose(c_n2[0], c_ref2, atol=1e-3, rtol=1e-3)

    print("KERNEL_OK")
</pallas_src>

<mosaic_0001>
module attributes {stable_mosaic.version = 11 : i64} {
  func.func @_actor_critic_kernel(%arg0: memref<64x16xf32, #tpu.memory_space<vmem>>, %arg1: memref<8x256xf32, #tpu.memory_space<vmem>>, %arg2: memref<144x512xf32, #tpu.memory_space<vmem>>, %arg3: memref<128x256xf32, #tpu.memory_space<vmem>>, %arg4: memref<1x768xf32, #tpu.memory_space<vmem>>, %arg5: memref<8x128xf32, #tpu.memory_space<vmem>>, %arg6: memref<8x256xf32, #tpu.memory_space<vmem>>) attributes {dimension_semantics = [], scalar_prefetch = 0 : i64, scratch_operands = 0 : i64, tpu.core_type = #tpu.core_type<tc>} {
    %c0 = arith.constant 0 : index
    %c0_0 = arith.constant 0 : index
    %0 = vector.load %arg1[%c0, %c0_0] : memref<8x256xf32, #tpu.memory_space<vmem>>, vector<8x128xf32>
    %c0_1 = arith.constant 0 : index
    %c128 = arith.constant 128 : index
    %1 = vector.load %arg1[%c0_1, %c128] : memref<8x256xf32, #tpu.memory_space<vmem>>, vector<8x128xf32>
    %c0_2 = arith.constant 0 : index
    %c0_3 = arith.constant 0 : index
    %2 = vector.load %arg2[%c0_2, %c0_3] : memref<144x512xf32, #tpu.memory_space<vmem>>, vector<16x512xf32>
    %c16 = arith.constant 16 : index
    %c0_4 = arith.constant 0 : index
    %3 = vector.load %arg2[%c16, %c0_4] : memref<144x512xf32, #tpu.memory_space<vmem>>, vector<128x512xf32>
    %c0_5 = arith.constant 0 : index
    %c0_6 = arith.constant 0 : index
    %4 = vector.load %arg4[%c0_5, %c0_6] : memref<1x768xf32, #tpu.memory_space<vmem>>, vector<1x512xf32>
    %c0_7 = arith.constant 0 : index
    %c0_8 = arith.constant 0 : index
    %5 = vector.load %arg0[%c0_7, %c0_8] : memref<64x16xf32, #tpu.memory_space<vmem>>, vector<64x16xf32>
    %cst = arith.constant dense<0.000000e+00> : vector<64x512xf32>
    %6 = tpu.matmul %5, %2, %cst {dimension_numbers = #tpu.dot_dimension_numbers<[1], [0], [0], [1], [0, 0, 1, 1], [], []>} : vector<64x16xf32>, vector<16x512xf32>, vector<64x512xf32> -> vector<64x512xf32>
    %7 = vector.broadcast %4 : vector<1x512xf32> to vector<64x512xf32>
    %8 = arith.addf %6, %7 : vector<64x512xf32>
    %9 = vector.extract_strided_slice %8 {offsets = [0, 0], sizes = [8, 512], strides = [1, 1]} : vector<64x512xf32> to vector<8x512xf32>
    %cst_9 = arith.constant dense<0.000000e+00> : vector<8x512xf32>
    %10 = tpu.matmul %0, %3, %cst_9 {dimension_numbers = #tpu.dot_dimension_numbers<[1], [0], [0], [1], [0, 0, 1, 1], [], []>} : vector<8x128xf32>, vector<128x512xf32>, vector<8x512xf32> -> vector<8x512xf32>
    %11 = arith.addf %9, %10 : vector<8x512xf32>
    %12 = vector.extract_strided_slice %11 {offsets = [0, 0], sizes = [8, 128], strides = [1, 1]} : vector<8x512xf32> to vector<8x128xf32>
    %cst_10 = arith.constant 5.000000e-01 : f32
    %13 = vector.broadcast %cst_10 : f32 to vector<8x128xf32>
    %14 = arith.mulf %13, %12 : vector<8x128xf32>
    %15 = math.tanh %14 : vector<8x128xf32>
    %cst_11 = arith.constant 5.000000e-01 : f32
    %16 = vector.broadcast %cst_11 : f32 to vector<8x128xf32>
    %17 = arith.mulf %16, %15 : vector<8x128xf32>
    %cst_12 = arith.constant 5.000000e-01 : f32
    %18 = vector.broadcast %cst_12 : f32 to vector<8x128xf32>
    %19 = arith.addf %17, %18 : vector<8x128xf32>
    %20 = vector.extract_strided_slice %11 {offsets = [0, 128], sizes = [8, 128], strides = [1, 1]} : vector<8x512xf32> to vector<8x128xf32>
    %cst_13 = arith.constant 5.000000e-01 : f32
    %21 = vector.broadcast %cst_13 : f32 to vector<8x128xf32>
    %22 = arith.mulf %21, %20 : vector<8x128xf32>
    %23 = math.tanh %22 : vector<8x128xf32>
    %cst_14 = arith.constant 5.000000e-01 : f32
    %24 = vector.broadcast %cst_14 : f32 to vector<8x128xf32>
    %25 = arith.mulf %24, %23 : vector<8x128xf32>
    %cst_15 = arith.constant 5.000000e-01 : f32
    %26 = vector.broadcast %cst_15 : f32 to vector<8x128xf32>
    %27 = arith.addf %25, %26 : vector<8x128xf32>
    %28 = vector.extract_strided_slice %11 {offsets = [0, 256], sizes = [8, 128], strides = [1, 1]} : vector<8x512xf32> to vector<8x128xf32>
    %29 = math.tanh %28 : vector<8x128xf32>
    %30 = vector.extract_strided_slice %11 {offsets = [0, 384], sizes = [8, 128], strides = [1, 1]} : vector<8x512xf32> to vector<8x128xf32>
    %cst_16 = arith.constant 5.000000e-01 : f32
    %31 = vector.broadcast %cst_16 : f32 to vector<8x128xf32>
    %32 = arith.mulf %31, %30 : vector<8x128xf32>
    %33 = math.tanh %32 : vector<8x128xf32>
    %cst_17 = arith.constant 5.000000e-01 : f32
    %34 = vector.broadcast %cst_17 : f32 to vector<8x128xf32>
    %35 = arith.mulf %34, %33 : vector<8x128xf32>
    %cst_18 = arith.constant 5.000000e-01 : f32
    %36 = vector.broadcast %cst_18 : f32 to vector<8x128xf32>
    %37 = arith.addf %35, %36 : vector<8x128xf32>
    %38 = arith.mulf %27, %1 : vector<8x128xf32>
    %39 = arith.mulf %19, %29 : vector<8x128xf32>
    %40 = arith.addf %38, %39 : vector<8x128xf32>
    %41 = math.tanh %40 : vector<8x128xf32>
    %42 = arith.mulf %37, %41 : vector<8x128xf32>
    %43 = vector.extract_strided_slice %8 {offsets = [8, 0], sizes = [8, 512], strides = [1, 1]} : vector<64x512xf32> to vector<8x512xf32>
    %cst_19 = arith.constant dense<0.000000e+00> : vector<8x512xf32>
    %44 = tpu.matmul %42, %3, %cst_19 {dimension_numbers = #tpu.dot_dimension_numbers<[1], [0], [0], [1], [0, 0, 1, 1], [], []>} : vector<8x128xf32>, vector<128x512xf32>, vector<8x512xf32> -> vector<8x512xf32>
    %45 = arith.addf %43, %44 : vector<8x512xf32>
    %46 = vector.extract_strided_slice %45 {offsets = [0, 0], sizes = [8, 128], strides = [1, 1]} : vector<8x512xf32> to vector<8x128xf32>
    %cst_20 = arith.constant 5.000000e-01 : f32
    %47 = vector.broadcast %cst_20 : f32 to vector<8x128xf32>
    %48 = arith.mulf %47, %46 : vector<8x128xf32>
    %49 = math.tanh %48 : vector<8x128xf32>
    %cst_21 = arith.constant 5.000000e-01 : f32
    %50 = vector.broadcast %cst_21 : f32 to vector<8x128xf32>
    %51 = arith.mulf %50, %49 : vector<8x128xf32>
    %cst_22 = arith.constant 5.000000e-01 : f32
    %52 = vector.broadcast %cst_22 : f32 to vector<8x128xf32>
    %53 = arith.addf %51, %52 : vector<8x128xf32>
    %54 = vector.extract_strided_slice %45 {offsets = [0, 128], sizes = [8, 128], strides = [1, 1]} : vector<8x512xf32> to vector<8x128xf32>
    %cst_23 = arith.constant 5.000000e-01 : f32
    %55 = vector.broadcast %cst_23 : f32 to vector<8x128xf32>
    %56 = arith.mulf %55, %54 : vector<8x128xf32>
    %57 = math.tanh %56 : vector<8x128xf32>
    %cst_24 = arith.constant 5.000000e-01 : f32
    %58 = vector.broadcast %cst_24 : f32 to vector<8x128xf32>
    %59 = arith.mulf %58, %57 : vector<8x128xf32>
    %cst_25 = arith.constant 5.000000e-01 : f32
    %60 = vector.broadcast %cst_25 : f32 to vector<8x128xf32>
    %61 = arith.addf %59, %60 : vector<8x128xf32>
    %62 = vector.extract_strided_slice %45 {offsets = [0, 256], sizes = [8, 128], strides = [1, 1]} : vector<8x512xf32> to vector<8x128xf32>
    %63 = math.tanh %62 : vector<8x128xf32>
    %64 = vector.extract_strided_slice %45 {offsets = [0, 384], sizes = [8, 128], strides = [1, 1]} : vector<8x512xf32> to vector<8x128xf32>
    %cst_26 = arith.constant 5.000000e-01 : f32
    %65 = vector.broadcast %cst_26 : f32 to vector<8x128xf32>
    %66 = arith.mulf %65, %64 : vector<8x128xf32>
    %67 = math.tanh %66 : vector<8x128xf32>
    %cst_27 = arith.constant 5.000000e-01 : f32
    %68 = vector.broadcast %cst_27 : f32 to vector<8x128xf32>
    %69 = arith.mulf %68, %67 : vector<8x128xf32>
    %cst_28 = arith.constant 5.000000e-01 : f32
    %70 = vector.broadcast %cst_28 : f32 to vector<8x128xf32>
    %71 = arith.addf %69, %70 : vector<8x128xf32>
    %72 = arith.mulf %61, %40 : vector<8x128xf32>
    %73 = arith.mulf %53, %63 : vector<8x128xf32>
    %74 = arith.addf %72, %73 : vector<8x128xf32>
    %75 = math.tanh %74 : vector<8x128xf32>
    %76 = arith.mulf %71, %75 : vector<8x128xf32>
    %77 = vector.extract_strided_slice %8 {offsets = [16, 0], sizes = [8, 512], strides = [1, 1]} : vector<64x512xf32> to vector<8x512xf32>
    %cst_29 = arith.constant dense<0.000000e+00> : vector<8x512xf32>
    %78 = tpu.matmul %76, %3, %cst_29 {dimension_numbers = #tpu.dot_dimension_numbers<[1], [0], [0], [1], [0, 0, 1, 1], [], []>} : vector<8x128xf32>, vector<128x512xf32>, vector<8x512xf32> -> vector<8x512xf32>
    %79 = arith.addf %77, %78 : vector<8x512xf32>
    %80 = vector.extract_strided_slice %79 {offsets = [0, 0], sizes = [8, 128], strides = [1, 1]} : vector<8x512xf32> to vector<8x128xf32>
    %cst_30 = arith.constant 5.000000e-01 : f32
    %81 = vector.broadcast %cst_30 : f32 to vector<8x128xf32>
    %82 = arith.mulf %81, %80 : vector<8x128xf32>
    %83 = math.tanh %82 : vector<8x128xf32>
    %cst_31 = arith.constant 5.000000e-01 : f32
    %84 = vector.broadcast %cst_31 : f32 to vector<8x128xf32>
    %85 = arith.mulf %84, %83 : vector<8x128xf32>
    %cst_32 = arith.constant 5.000000e-01 : f32
    %86 = vector.broadcast %cst_32 : f32 to vector<8x128xf32>
    %87 = arith.addf %85, %86 : vector<8x128xf32>
    %88 = vector.extract_strided_slice %79 {offsets = [0, 128], sizes = [8, 128], strides = [1, 1]} : vector<8x512xf32> to vector<8x128xf32>
    %cst_33 = arith.constant 5.000000e-01 : f32
    %89 = vector.broadcast %cst_33 : f32 to vector<8x128xf32>
    %90 = arith.mulf %89, %88 : vector<8x128xf32>
    %91 = math.tanh %90 : vector<8x128xf32>
    %cst_34 = arith.constant 5.000000e-01 : f32
    %92 = vector.broadcast %cst_34 : f32 to vector<8x128xf32>
    %93 = arith.mulf %92, %91 : vector<8x128xf32>
    %cst_35 = arith.constant 5.000000e-01 : f32
    %94 = vector.broadcast %cst_35 : f32 to vector<8x128xf32>
    %95 = arith.addf %93, %94 : vector<8x128xf32>
    %96 = vector.extract_strided_slice %79 {offsets = [0, 256], sizes = [8, 128], strides = [1, 1]} : vector<8x512xf32> to vector<8x128xf32>
    %97 = math.tanh %96 : vector<8x128xf32>
    %98 = vector.extract_strided_slice %79 {offsets = [0, 384], sizes = [8, 128], strides = [1, 1]} : vector<8x512xf32> to vector<8x128xf32>
    %cst_36 = arith.constant 5.000000e-01 : f32
    %99 = vector.broadcast %cst_36 : f32 to vector<8x128xf32>
    %100 = arith.mulf %99, %98 : vector<8x128xf32>
    %101 = math.tanh %100 : vector<8x128xf32>
    %cst_37 = arith.constant 5.000000e-01 : f32
    %102 = vector.broadcast %cst_37 : f32 to vector<8x128xf32>
    %103 = arith.mulf %102, %101 : vector<8x128xf32>
    %cst_38 = arith.constant 5.000000e-01 : f32
    %104 = vector.broadcast %cst_38 : f32 to vector<8x128xf32>
    %105 = arith.addf %103, %104 : vector<8x128xf32>
    %106 = arith.mulf %95, %74 : vector<8x128xf32>
    %107 = arith.mulf %87, %97 : vector<8x128xf32>
    %108 = arith.addf %106, %107 : vector<8x128xf32>
    %109 = math.tanh %108 : vector<8x128xf32>
    %110 = arith.mulf %105, %109 : vector<8x128xf32>
    %111 = vector.extract_strided_slice %8 {offsets = [24, 0], sizes = [8, 512], strides = [1, 1]} : vector<64x512xf32> to vector<8x512xf32>
    %cst_39 = arith.constant dense<0.000000e+00> : vector<8x512xf32>
    %112 = tpu.matmul %110, %3, %cst_39 {dimension_numbers = #tpu.dot_dimension_numbers<[1], [0], [0], [1], [0, 0, 1, 1], [], []>} : vector<8x128xf32>, vector<128x512xf32>, vector<8x512xf32> -> vector<8x512xf32>
    %113 = arith.addf %111, %112 : vector<8x512xf32>
    %114 = vector.extract_strided_slice %113 {offsets = [0, 0], sizes = [8, 128], strides = [1, 1]} : vector<8x512xf32> to vector<8x128xf32>
    %cst_40 = arith.constant 5.000000e-01 : f32
    %115 = vector.broadcast %cst_40 : f32 to vector<8x128xf32>
    %116 = arith.mulf %115, %114 : vector<8x128xf32>
    %117 = math.tanh %116 : vector<8x128xf32>
    %cst_41 = arith.constant 5.000000e-01 : f32
    %118 = vector.broadcast %cst_41 : f32 to vector<8x128xf32>
    %119 = arith.mulf %118, %117 : vector<8x128xf32>
    %cst_42 = arith.constant 5.000000e-01 : f32
    %120 = vector.broadcast %cst_42 : f32 to vector<8x128xf32>
    %121 = arith.addf %119, %120 : vector<8x128xf32>
    %122 = vector.extract_strided_slice %113 {offsets = [0, 128], sizes = [8, 128], strides = [1, 1]} : vector<8x512xf32> to vector<8x128xf32>
    %cst_43 = arith.constant 5.000000e-01 : f32
    %123 = vector.broadcast %cst_43 : f32 to vector<8x128xf32>
    %124 = arith.mulf %123, %122 : vector<8x128xf32>
    %125 = math.tanh %124 : vector<8x128xf32>
    %cst_44 = arith.constant 5.000000e-01 : f32
    %126 = vector.broadcast %cst_44 : f32 to vector<8x128xf32>
    %127 = arith.mulf %126, %125 : vector<8x128xf32>
    %cst_45 = arith.constant 5.000000e-01 : f32
    %128 = vector.broadcast %cst_45 : f32 to vector<8x128xf32>
    %129 = arith.addf %127, %128 : vector<8x128xf32>
    %130 = vector.extract_strided_slice %113 {offsets = [0, 256], sizes = [8, 128], strides = [1, 1]} : vector<8x512xf32> to vector<8x128xf32>
    %131 = math.tanh %130 : vector<8x128xf32>
    %132 = vector.extract_strided_slice %113 {offsets = [0, 384], sizes = [8, 128], strides = [1, 1]} : vector<8x512xf32> to vector<8x128xf32>
    %cst_46 = arith.constant 5.000000e-01 : f32
    %133 = vector.broadcast %cst_46 : f32 to vector<8x128xf32>
    %134 = arith.mulf %133, %132 : vector<8x128xf32>
    %135 = math.tanh %134 : vector<8x128xf32>
    %cst_47 = arith.constant 5.000000e-01 : f32
    %136 = vector.broadcast %cst_47 : f32 to vector<8x128xf32>
    %137 = arith.mulf %136, %135 : vector<8x128xf32>
    %cst_48 = arith.constant 5.000000e-01 : f32
    %138 = vector.broadcast %cst_48 : f32 to vector<8x128xf32>
    %139 = arith.addf %137, %138 : vector<8x128xf32>
    %140 = arith.mulf %129, %108 : vector<8x128xf32>
    %141 = arith.mulf %121, %131 : vector<8x128xf32>
    %142 = arith.addf %140, %141 : vector<8x128xf32>
    %143 = math.tanh %142 : vector<8x128xf32>
    %144 = arith.mulf %139, %143 : vector<8x128xf32>
    %145 = vector.extract_strided_slice %8 {offsets = [32, 0], sizes = [8, 512], strides = [1, 1]} : vector<64x512xf32> to vector<8x512xf32>
    %cst_49 = arith.constant dense<0.000000e+00> : vector<8x512xf32>
    %146 = tpu.matmul %144, %3, %cst_49 {dimension_numbers = #tpu.dot_dimension_numbers<[1], [0], [0], [1], [0, 0, 1, 1], [], []>} : vector<8x128xf32>, vector<128x512xf32>, vector<8x512xf32> -> vector<8x512xf32>
    %147 = arith.addf %145, %146 : vector<8x512xf32>
    %148 = vector.extract_strided_slice %147 {offsets = [0, 0], sizes = [8, 128], strides = [1, 1]} : vector<8x512xf32> to vector<8x128xf32>
    %cst_50 = arith.constant 5.000000e-01 : f32
    %149 = vector.broadcast %cst_50 : f32 to vector<8x128xf32>
    %150 = arith.mulf %149, %148 : vector<8x128xf32>
    %151 = math.tanh %150 : vector<8x128xf32>
    %cst_51 = arith.constant 5.000000e-01 : f32
    %152 = vector.broadcast %cst_51 : f32 to vector<8x128xf32>
    %153 = arith.mulf %152, %151 : vector<8x128xf32>
    %cst_52 = arith.constant 5.000000e-01 : f32
    %154 = vector.broadcast %cst_52 : f32 to vector<8x128xf32>
    %155 = arith.addf %153, %154 : vector<8x128xf32>
    %156 = vector.extract_strided_slice %147 {offsets = [0, 128], sizes = [8, 128], strides = [1, 1]} : vector<8x512xf32> to vector<8x128xf32>
    %cst_53 = arith.constant 5.000000e-01 : f32
    %157 = vector.broadcast %cst_53 : f32 to vector<8x128xf32>
    %158 = arith.mulf %157, %156 : vector<8x128xf32>
    %159 = math.tanh %158 : vector<8x128xf32>
    %cst_54 = arith.constant 5.000000e-01 : f32
    %160 = vector.broadcast %cst_54 : f32 to vector<8x128xf32>
    %161 = arith.mulf %160, %159 : vector<8x128xf32>
    %cst_55 = arith.constant 5.000000e-01 : f32
    %162 = vector.broadcast %cst_55 : f32 to vector<8x128xf32>
    %163 = arith.addf %161, %162 : vector<8x128xf32>
    %164 = vector.extract_strided_slice %147 {offsets = [0, 256], sizes = [8, 128], strides = [1, 1]} : vector<8x512xf32> to vector<8x128xf32>
    %165 = math.tanh %164 : vector<8x128xf32>
    %166 = vector.extract_strided_slice %147 {offsets = [0, 384], sizes = [8, 128], strides = [1, 1]} : vector<8x512xf32> to vector<8x128xf32>
    %cst_56 = arith.constant 5.000000e-01 : f32
    %167 = vector.broadcast %cst_56 : f32 to vector<8x128xf32>
    %168 = arith.mulf %167, %166 : vector<8x128xf32>
    %169 = math.tanh %168 : vector<8x128xf32>
    %cst_57 = arith.constant 5.000000e-01 : f32
    %170 = vector.broadcast %cst_57 : f32 to vector<8x128xf32>
    %171 = arith.mulf %170, %169 : vector<8x128xf32>
    %cst_58 = arith.constant 5.000000e-01 : f32
    %172 = vector.broadcast %cst_58 : f32 to vector<8x128xf32>
    %173 = arith.addf %171, %172 : vector<8x128xf32>
    %174 = arith.mulf %163, %142 : vector<8x128xf32>
    %175 = arith.mulf %155, %165 : vector<8x128xf32>
    %176 = arith.addf %174, %175 : vector<8x128xf32>
    %177 = math.tanh %176 : vector<8x128xf32>
    %178 = arith.mulf %173, %177 : vector<8x128xf32>
    %179 = vector.extract_strided_slice %8 {offsets = [40, 0], sizes = [8, 512], strides = [1, 1]} : vector<64x512xf32> to vector<8x512xf32>
    %cst_59 = arith.constant dense<0.000000e+00> : vector<8x512xf32>
    %180 = tpu.matmul %178, %3, %cst_59 {dimension_numbers = #tpu.dot_dimension_numbers<[1], [0], [0], [1], [0, 0, 1, 1], [], []>} : vector<8x128xf32>, vector<128x512xf32>, vector<8x512xf32> -> vector<8x512xf32>
    %181 = arith.addf %179, %180 : vector<8x512xf32>
    %182 = vector.extract_strided_slice %181 {offsets = [0, 0], sizes = [8, 128], strides = [1, 1]} : vector<8x512xf32> to vector<8x128xf32>
    %cst_60 = arith.constant 5.000000e-01 : f32
    %183 = vector.broadcast %cst_60 : f32 to vector<8x128xf32>
    %184 = arith.mulf %183, %182 : vector<8x128xf32>
    %185 = math.tanh %184 : vector<8x128xf32>
    %cst_61 = arith.constant 5.000000e-01 : f32
    %186 = vector.broadcast %cst_61 : f32 to vector<8x128xf32>
    %187 = arith.mulf %186, %185 : vector<8x128xf32>
    %cst_62 = arith.constant 5.000000e-01 : f32
    %188 = vector.broadcast %cst_62 : f32 to vector<8x128xf32>
    %189 = arith.addf %187, %188 : vector<8x128xf32>
    %190 = vector.extract_strided_slice %181 {offsets = [0, 128], sizes = [8, 128], strides = [1, 1]} : vector<8x512xf32> to vector<8x128xf32>
    %cst_63 = arith.constant 5.000000e-01 : f32
    %191 = vector.broadcast %cst_63 : f32 to vector<8x128xf32>
    %192 = arith.mulf %191, %190 : vector<8x128xf32>
    %193 = math.tanh %192 : vector<8x128xf32>
    %cst_64 = arith.constant 5.000000e-01 : f32
    %194 = vector.broadcast %cst_64 : f32 to vector<8x128xf32>
    %195 = arith.mulf %194, %193 : vector<8x128xf32>
    %cst_65 = arith.constant 5.000000e-01 : f32
    %196 = vector.broadcast %cst_65 : f32 to vector<8x128xf32>
    %197 = arith.addf %195, %196 : vector<8x128xf32>
    %198 = vector.extract_strided_slice %181 {offsets = [0, 256], sizes = [8, 128], strides = [1, 1]} : vector<8x512xf32> to vector<8x128xf32>
    %199 = math.tanh %198 : vector<8x128xf32>
    %200 = vector.extract_strided_slice %181 {offsets = [0, 384], sizes = [8, 128], strides = [1, 1]} : vector<8x512xf32> to vector<8x128xf32>
    %cst_66 = arith.constant 5.000000e-01 : f32
    %201 = vector.broadcast %cst_66 : f32 to vector<8x128xf32>
    %202 = arith.mulf %201, %200 : vector<8x128xf32>
    %203 = math.tanh %202 : vector<8x128xf32>
    %cst_67 = arith.constant 5.000000e-01 : f32
    %204 = vector.broadcast %cst_67 : f32 to vector<8x128xf32>
    %205 = arith.mulf %204, %203 : vector<8x128xf32>
    %cst_68 = arith.constant 5.000000e-01 : f32
    %206 = vector.broadcast %cst_68 : f32 to vector<8x128xf32>
    %207 = arith.addf %205, %206 : vector<8x128xf32>
    %208 = arith.mulf %197, %176 : vector<8x128xf32>
    %209 = arith.mulf %189, %199 : vector<8x128xf32>
    %210 = arith.addf %208, %209 : vector<8x128xf32>
    %211 = math.tanh %210 : vector<8x128xf32>
    %212 = arith.mulf %207, %211 : vector<8x128xf32>
    %213 = vector.extract_strided_slice %8 {offsets = [48, 0], sizes = [8, 512], strides = [1, 1]} : vector<64x512xf32> to vector<8x512xf32>
    %cst_69 = arith.constant dense<0.000000e+00> : vector<8x512xf32>
    %214 = tpu.matmul %212, %3, %cst_69 {dimension_numbers = #tpu.dot_dimension_numbers<[1], [0], [0], [1], [0, 0, 1, 1], [], []>} : vector<8x128xf32>, vector<128x512xf32>, vector<8x512xf32> -> vector<8x512xf32>
    %215 = arith.addf %213, %214 : vector<8x512xf32>
    %216 = vector.extract_strided_slice %215 {offsets = [0, 0], sizes = [8, 128], strides = [1, 1]} : vector<8x512xf32> to vector<8x128xf32>
    %cst_70 = arith.constant 5.000000e-01 : f32
    %217 = vector.broadcast %cst_70 : f32 to vector<8x128xf32>
    %218 = arith.mulf %217, %216 : vector<8x128xf32>
    %219 = math.tanh %218 : vector<8x128xf32>
    %cst_71 = arith.constant 5.000000e-01 : f32
    %220 = vector.broadcast %cst_71 : f32 to vector<8x128xf32>
    %221 = arith.mulf %220, %219 : vector<8x128xf32>
    %cst_72 = arith.constant 5.000000e-01 : f32
    %222 = vector.broadcast %cst_72 : f32 to vector<8x128xf32>
    %223 = arith.addf %221, %222 : vector<8x128xf32>
    %224 = vector.extract_strided_slice %215 {offsets = [0, 128], sizes = [8, 128], strides = [1, 1]} : vector<8x512xf32> to vector<8x128xf32>
    %cst_73 = arith.constant 5.000000e-01 : f32
    %225 = vector.broadcast %cst_73 : f32 to vector<8x128xf32>
    %226 = arith.mulf %225, %224 : vector<8x128xf32>
    %227 = math.tanh %226 : vector<8x128xf32>
    %cst_74 = arith.constant 5.000000e-01 : f32
    %228 = vector.broadcast %cst_74 : f32 to vector<8x128xf32>
    %229 = arith.mulf %228, %227 : vector<8x128xf32>
    %cst_75 = arith.constant 5.000000e-01 : f32
    %230 = vector.broadcast %cst_75 : f32 to vector<8x128xf32>
    %231 = arith.addf %229, %230 : vector<8x128xf32>
    %232 = vector.extract_strided_slice %215 {offsets = [0, 256], sizes = [8, 128], strides = [1, 1]} : vector<8x512xf32> to vector<8x128xf32>
    %233 = math.tanh %232 : vector<8x128xf32>
    %234 = vector.extract_strided_slice %215 {offsets = [0, 384], sizes = [8, 128], strides = [1, 1]} : vector<8x512xf32> to vector<8x128xf32>
    %cst_76 = arith.constant 5.000000e-01 : f32
    %235 = vector.broadcast %cst_76 : f32 to vector<8x128xf32>
    %236 = arith.mulf %235, %234 : vector<8x128xf32>
    %237 = math.tanh %236 : vector<8x128xf32>
    %cst_77 = arith.constant 5.000000e-01 : f32
    %238 = vector.broadcast %cst_77 : f32 to vector<8x128xf32>
    %239 = arith.mulf %238, %237 : vector<8x128xf32>
    %cst_78 = arith.constant 5.000000e-01 : f32
    %240 = vector.broadcast %cst_78 : f32 to vector<8x128xf32>
    %241 = arith.addf %239, %240 : vector<8x128xf32>
    %242 = arith.mulf %231, %210 : vector<8x128xf32>
    %243 = arith.mulf %223, %233 : vector<8x128xf32>
    %244 = arith.addf %242, %243 : vector<8x128xf32>
    %245 = math.tanh %244 : vector<8x128xf32>
    %246 = arith.mulf %241, %245 : vector<8x128xf32>
    %247 = vector.extract_strided_slice %8 {offsets = [56, 0], sizes = [8, 512], strides = [1, 1]} : vector<64x512xf32> to vector<8x512xf32>
    %cst_79 = arith.constant dense<0.000000e+00> : vector<8x512xf32>
    %248 = tpu.matmul %246, %3, %cst_79 {dimension_numbers = #tpu.dot_dimension_numbers<[1], [0], [0], [1], [0, 0, 1, 1], [], []>} : vector<8x128xf32>, vector<128x512xf32>, vector<8x512xf32> -> vector<8x512xf32>
    %249 = arith.addf %247, %248 : vector<8x512xf32>
    %250 = vector.extract_strided_slice %249 {offsets = [0, 0], sizes = [8, 128], strides = [1, 1]} : vector<8x512xf32> to vector<8x128xf32>
    %cst_80 = arith.constant 5.000000e-01 : f32
    %251 = vector.broadcast %cst_80 : f32 to vector<8x128xf32>
    %252 = arith.mulf %251, %250 : vector<8x128xf32>
    %253 = math.tanh %252 : vector<8x128xf32>
    %cst_81 = arith.constant 5.000000e-01 : f32
    %254 = vector.broadcast %cst_81 : f32 to vector<8x128xf32>
    %255 = arith.mulf %254, %253 : vector<8x128xf32>
    %cst_82 = arith.constant 5.000000e-01 : f32
    %256 = vector.broadcast %cst_82 : f32 to vector<8x128xf32>
    %257 = arith.addf %255, %256 : vector<8x128xf32>
    %258 = vector.extract_strided_slice %249 {offsets = [0, 128], sizes = [8, 128], strides = [1, 1]} : vector<8x512xf32> to vector<8x128xf32>
    %cst_83 = arith.constant 5.000000e-01 : f32
    %259 = vector.broadcast %cst_83 : f32 to vector<8x128xf32>
    %260 = arith.mulf %259, %258 : vector<8x128xf32>
    %261 = math.tanh %260 : vector<8x128xf32>
    %cst_84 = arith.constant 5.000000e-01 : f32
    %262 = vector.broadcast %cst_84 : f32 to vector<8x128xf32>
    %263 = arith.mulf %262, %261 : vector<8x128xf32>
    %cst_85 = arith.constant 5.000000e-01 : f32
    %264 = vector.broadcast %cst_85 : f32 to vector<8x128xf32>
    %265 = arith.addf %263, %264 : vector<8x128xf32>
    %266 = vector.extract_strided_slice %249 {offsets = [0, 256], sizes = [8, 128], strides = [1, 1]} : vector<8x512xf32> to vector<8x128xf32>
    %267 = math.tanh %266 : vector<8x128xf32>
    %268 = vector.extract_strided_slice %249 {offsets = [0, 384], sizes = [8, 128], strides = [1, 1]} : vector<8x512xf32> to vector<8x128xf32>
    %cst_86 = arith.constant 5.000000e-01 : f32
    %269 = vector.broadcast %cst_86 : f32 to vector<8x128xf32>
    %270 = arith.mulf %269, %268 : vector<8x128xf32>
    %271 = math.tanh %270 : vector<8x128xf32>
    %cst_87 = arith.constant 5.000000e-01 : f32
    %272 = vector.broadcast %cst_87 : f32 to vector<8x128xf32>
    %273 = arith.mulf %272, %271 : vector<8x128xf32>
    %cst_88 = arith.constant 5.000000e-01 : f32
    %274 = vector.broadcast %cst_88 : f32 to vector<8x128xf32>
    %275 = arith.addf %273, %274 : vector<8x128xf32>
    %276 = arith.mulf %265, %244 : vector<8x128xf32>
    %277 = arith.mulf %257, %267 : vector<8x128xf32>
    %278 = arith.addf %276, %277 : vector<8x128xf32>
    %279 = math.tanh %278 : vector<8x128xf32>
    %280 = arith.mulf %275, %279 : vector<8x128xf32>
    %c0_89 = arith.constant 0 : index
    %c0_90 = arith.constant 0 : index
    %281 = vector.load %arg6[%c0_89, %c0_90] : memref<8x256xf32, #tpu.memory_space<vmem>>, vector<8x128xf32>
    tpu.vector_store %arg6[%c0_89, %c0_90], %280 {strides = array<i32>} : memref<8x256xf32, #tpu.memory_space<vmem>>, vector<8x128xf32>,
    %c0_91 = arith.constant 0 : index
    %c128_92 = arith.constant 128 : index
    %282 = vector.load %arg6[%c0_91, %c128_92] : memref<8x256xf32, #tpu.memory_space<vmem>>, vector<8x128xf32>
    tpu.vector_store %arg6[%c0_91, %c128_92], %278 {strides = array<i32>} : memref<8x256xf32, #tpu.memory_space<vmem>>, vector<8x128xf32>,
    %c0_93 = arith.constant 0 : index
    %c512 = arith.constant 512 : index
    %283 = vector.load %arg4[%c0_93, %c512] : memref<1x768xf32, #tpu.memory_space<vmem>>, vector<1x128xf32>
    %c0_94 = arith.constant 0 : index
    %c640 = arith.constant 640 : index
    %284 = vector.load %arg4[%c0_94, %c640] : memref<1x768xf32, #tpu.memory_space<vmem>>, vector<1x128xf32>
    %c0_95 = arith.constant 0 : index
    %c0_96 = arith.constant 0 : index
    %285 = vector.load %arg3[%c0_95, %c0_96] : memref<128x256xf32, #tpu.memory_space<vmem>>, vector<128x128xf32>
    %cst_97 = arith.constant dense<0.000000e+00> : vector<8x128xf32>
    %286 = tpu.matmul %280, %285, %cst_97 {dimension_numbers = #tpu.dot_dimension_numbers<[1], [0], [0], [1], [0, 0, 1, 1], [], []>} : vector<8x128xf32>, vector<128x128xf32>, vector<8x128xf32> -> vector<8x128xf32>
    %287 = vector.broadcast %283 : vector<1x128xf32> to vector<8x128xf32>
    %288 = arith.addf %286, %287 : vector<8x128xf32>
    %cst_98 = arith.constant 0.000000e+00 : f32
    %289 = vector.broadcast %cst_98 : f32 to vector<8x128xf32>
    %290 = arith.maximumf %288, %289 : vector<8x128xf32>
    %c0_99 = arith.constant 0 : index
    %c128_100 = arith.constant 128 : index
    %291 = vector.load %arg3[%c0_99, %c128_100] : memref<128x256xf32, #tpu.memory_space<vmem>>, vector<128x128xf32>
    %cst_101 = arith.constant dense<0.000000e+00> : vector<8x128xf32>
    %292 = tpu.matmul %290, %291, %cst_101 {dimension_numbers = #tpu.dot_dimension_numbers<[1], [0], [0], [1], [0, 0, 1, 1], [], []>} : vector<8x128xf32>, vector<128x128xf32>, vector<8x128xf32> -> vector<8x128xf32>
    %293 = vector.broadcast %284 : vector<1x128xf32> to vector<8x128xf32>
    %294 = arith.addf %292, %293 : vector<8x128xf32>
    %c0_102 = arith.constant 0 : index
    %c0_103 = arith.constant 0 : index
    %295 = vector.load %arg5[%c0_102, %c0_103] : memref<8x128xf32, #tpu.memory_space<vmem>>, vector<8x128xf32>
    tpu.vector_store %arg5[%c0_102, %c0_103], %294 {strides = array<i32>} : memref<8x128xf32, #tpu.memory_space<vmem>>, vector<8x128xf32>,
    return
  }
}

</mosaic_0001>

<llo_original>
// kernel: tpu_custom_call.1
$region0: #{tpu_custom_call.1}
  #allocation0 [shape = 'u32[]', space=smem, size = 0x4, offset = 0x4, fixed_abs, tag = 'smem constant byte address 0x4 - core index']
  #allocation1 [shape = 'u32[72,128]{1,0:T(1,128)}', space=vmem, size = 0x9000, scoped, tag = 'internal scratch']
  %s0 = inlined_call_operand.vmem [shape: f32[64,16], index: 0, kind: input, shape index: {}]
  %s1 = inlined_call_operand.vmem [shape: f32[8,256], index: 1, kind: input, shape index: {}]
  %s2 = inlined_call_operand.hbm [shape: f32[144,512], index: 2, kind: input, shape index: {}]
  %s3 = inlined_call_operand.hbm [shape: f32[128,256], index: 3, kind: input, shape index: {}]
  %s4 = inlined_call_operand.vmem [shape: f32[1,768], index: 4, kind: input, shape index: {}]
  %s5 = inlined_call_operand.hbm [shape: f32[8,128], index: 5, kind: output, shape index: {0}]
  %s6 = inlined_call_operand.hbm [shape: f32[8,256], index: 6, kind: output, shape index: {1}]
  %7 = xla_tuple %s5, %s6
  %s8 = sld [smem:[#allocation0]]
  $region46: #{tpu_custom_call.1} parent=0
    _
  %s10 = ssub.s32 1, %s8
  %s11 = scalar_select 0, %s10, %s8
  $region1: #{tpu_custom_call.1} parent=0
    #allocation2 [shape = 'u8[294912]{0}', space=vmem, size = 0x48000, scoped, tag = 'input window, operand 2, single buffered']
    #allocation3 [shape = 's32[1]{0}', space=sflag, size = 0x4, scoped, tag = 'scoped memory for tpu_custom_call.1']
    #allocation4 [shape = 's32[1]{0}', space=sflag, size = 0x4, scoped, tag = 'scoped memory for tpu_custom_call.1']
    #allocation5 [shape = 'u8[131072]{0}', space=vmem, size = 0x20000, scoped, tag = 'input window, operand 3, single buffered']
    #allocation6 [shape = 's32[1]{0}', space=sflag, size = 0x4, scoped, tag = 'scoped memory for tpu_custom_call.1']
    #allocation7 [shape = 'u8[4096]{0}', space=vmem, size = 0x1000, scoped, tag = 'output window, operand 0, single buffered']
    #allocation8 [shape = 'u8[8192]{0}', space=vmem, size = 0x2000, scoped, tag = 'output window, operand 1, single buffered']
    #allocation9 [shape = 's32[1]{0}', space=sflag, size = 0x4, scoped, tag = 'scoped memory for tpu_custom_call.1']
    %12 = vsyncpa [#allocation3], 0
    %13 = vsyncpa [#allocation6], 0
    %14 = vsyncpa [#allocation4], 0
    %15 = vsyncpa [#allocation9], 0
    // Predicated region
    $region2: #{tpu_custom_call.1} parent=1 // pred_check
      _
    $region3: #{tpu_custom_call.1} parent=1 // pred_check_branch
      %17 = sbr.rel (0) target = $region5
    $region4: #{tpu_custom_call.1} parent=1 // pred_region
      _
    $region5: #{tpu_custom_call.1} parent=1 // pred_fallthru
      _
    // Predicated region
    $region6: #{tpu_custom_call.1} parent=1 // pred_check
      _
    $region7: #{tpu_custom_call.1} parent=1 // pred_check_branch
      %19 = sbr.rel (0) target = $region9
    $region8: #{tpu_custom_call.1} parent=1 // pred_region
      _
    $region9: #{tpu_custom_call.1} parent=1 // pred_fallthru
      _
    // Predicated region
    $region10: #{tpu_custom_call.1} parent=1 // pred_check
      _
    $region11: #{tpu_custom_call.1} parent=1 // pred_check_branch
      %21 = sbr.rel (0) target = $region13
    $region12: #{tpu_custom_call.1} parent=1 // pred_region
      %23 = vsyncadd [#allocation3], 0
      %s24 = sshll.u32 %s2, 4
      %s25 = int_to_ptr.hbm [resolvable:$true] %s24
      %s26 = sshll.u32 [#allocation2], 4
      %s27 = int_to_ptr.vmem [resolvable:$true] %s26
      %32 = dma.hbm_to_vmem [thread:$0]  %s25, 9216, %s27, [#allocation3], 512, 512, 32
    $region13: #{tpu_custom_call.1} parent=1 // pred_fallthru
      _
    // Predicated region
    $region14: #{tpu_custom_call.1} parent=1 // pred_check
      _
    $region15: #{tpu_custom_call.1} parent=1 // pred_check_branch
      %34 = sbr.rel (0) target = $region17
    $region16: #{tpu_custom_call.1} parent=1 // pred_region
      %36 = vsyncadd [#allocation6], 0
      %s37 = sshll.u32 %s3, 4
      %s38 = int_to_ptr.hbm [resolvable:$true] %s37
      %s39 = sshll.u32 [#allocation5], 4
      %s40 = int_to_ptr.vmem [resolvable:$true] %s39
      %45 = dma.hbm_to_vmem [thread:$0]  %s38, 4096, %s40, [#allocation6], 256, 256, 16
    $region17: #{tpu_custom_call.1} parent=1 // pred_fallthru
      _
    // Predicated region
    $region18: #{tpu_custom_call.1} parent=1 // pred_check
      _
    $region19: #{tpu_custom_call.1} parent=1 // pred_check_branch
      %47 = sbr.rel (0) target = $region21
    $region20: #{tpu_custom_call.1} parent=1 // pred_region
      _
    $region21: #{tpu_custom_call.1} parent=1 // pred_fallthru
      _
    // Predicated region
    $region22: #{tpu_custom_call.1} parent=1 // pred_check
      _
    $region23: #{tpu_custom_call.1} parent=1 // pred_check_branch
      %49 = sbr.rel (0) target = $region25
    $region24: #{tpu_custom_call.1} parent=1 // pred_region
      %51 = dma.done [#allocation3], 9216
    $region25: #{tpu_custom_call.1} parent=1 // pred_fallthru
      _
    // Predicated region
    $region26: #{tpu_custom_call.1} parent=1 // pred_check
      _
    $region27: #{tpu_custom_call.1} parent=1 // pred_check_branch
      %53 = sbr.rel (0) target = $region29
    $region28: #{tpu_custom_call.1} parent=1 // pred_region
      %55 = dma.done [#allocation6], 4096
    $region29: #{tpu_custom_call.1} parent=1 // pred_fallthru
      _
    %v56 = vld [vmem:[%s1] sm:$0xff]
    %v57 = vld [vmem:[%s1 + $0x8] sm:$0xff]
    %v58 = vld [vmem:[#allocation2] sm:$0xff]
    %v59 = vld [vmem:[#allocation2 + $0x8] sm:$0xff]
    %v60 = vld [vmem:[#allocation2 + $0x10] sm:$0xff]
    %v61 = vld [vmem:[#allocation2 + $0x18] sm:$0xff]
    %v62 = vld [vmem:[#allocation2 + $0x20] sm:$0xff]
    %v63 = vld [vmem:[#allocation2 + $0x28] sm:$0xff]
    %v64 = vld [vmem:[#allocation2 + $0x30] sm:$0xff]
    %v65 = vld [vmem:[#allocation2 + $0x38] sm:$0xff]
    %v66 = vld [vmem:[#allocation2 + $0x40] sm:$0xff]
    %v67 = vld [vmem:[#allocation2 + $0x48] sm:$0xff]
    %v68 = vld [vmem:[#allocation2 + $0x50] sm:$0xff]
    %v69 = vld [vmem:[#allocation2 + $0x58] sm:$0xff]
    %v70 = vld [vmem:[#allocation2 + $0x60] sm:$0xff]
    %v71 = vld [vmem:[#allocation2 + $0x68] sm:$0xff]
    %v72 = vld [vmem:[#allocation2 + $0x70] sm:$0xff]
    %v73 = vld [vmem:[#allocation2 + $0x78] sm:$0xff]
    %v74 = vld [vmem:[#allocation2 + $0x80] sm:$0xff]
    %v75 = vld [vmem:[#allocation2 + $0x88] sm:$0xff]
    %v76 = vld [vmem:[#allocation2 + $0x90] sm:$0xff]
    %v77 = vld [vmem:[#allocation2 + $0x98] sm:$0xff]
    %v78 = vld [vmem:[#allocation2 + $0xa0] sm:$0xff]
    %v79 = vld [vmem:[#allocation2 + $0xa8] sm:$0xff]
    %v80 = vld [vmem:[#allocation2 + $0xb0] sm:$0xff]
    %v81 = vld [vmem:[#allocation2 + $0xb8] sm:$0xff]
    %v82 = vld [vmem:[#allocation2 + $0xc0] sm:$0xff]
    %v83 = vld [vmem:[#allocation2 + $0xc8] sm:$0xff]
    %v84 = vld [vmem:[#allocation2 + $0xd0] sm:$0xff]
    %v85 = vld [vmem:[#allocation2 + $0xd8] sm:$0xff]
    %v86 = vld [vmem:[#allocation2 + $0xe0] sm:$0xff]
    %v87 = vld [vmem:[#allocation2 + $0xe8] sm:$0xff]
    %v88 = vld [vmem:[#allocation2 + $0xf0] sm:$0xff]
    %v89 = vld [vmem:[#allocation2 + $0xf8] sm:$0xff]
    %v90 = vld [vmem:[#allocation2 + $0x100] sm:$0xff]
    %v91 = vld [vmem:[#allocation2 + $0x108] sm:$0xff]
    %v92 = vld [vmem:[#allocation2 + $0x110] sm:$0xff]
    %v93 = vld [vmem:[#allocation2 + $0x118] sm:$0xff]
    %v94 = vld [vmem:[#allocation2 + $0x120] sm:$0xff]
    %v95 = vld [vmem:[#allocation2 + $0x128] sm:$0xff]
    %v96 = vld [vmem:[#allocation2 + $0x130] sm:$0xff]
    %v97 = vld [vmem:[#allocation2 + $0x138] sm:$0xff]
    %v98 = vld [vmem:[#allocation2 + $0x140] sm:$0xff]
    %v99 = vld [vmem:[#allocation2 + $0x148] sm:$0xff]
    %v100 = vld [vmem:[#allocation2 + $0x150] sm:$0xff]
    %v101 = vld [vmem:[#allocation2 + $0x158] sm:$0xff]
    %v102 = vld [vmem:[#allocation2 + $0x160] sm:$0xff]
    %v103 = vld [vmem:[#allocation2 + $0x168] sm:$0xff]
    %v104 = vld [vmem:[#allocation2 + $0x170] sm:$0xff]
    %v105 = vld [vmem:[#allocation2 + $0x178] sm:$0xff]
    %v106 = vld [vmem:[#allocation2 + $0x180] sm:$0xff]
    %v107 = vld [vmem:[#allocation2 + $0x188] sm:$0xff]
    %v108 = vld [vmem:[#allocation2 + $0x190] sm:$0xff]
    %v109 = vld [vmem:[#allocation2 + $0x198] sm:$0xff]
    %v110 = vld [vmem:[#allocation2 + $0x1a0] sm:$0xff]
    %v111 = vld [vmem:[#allocation2 + $0x1a8] sm:$0xff]
    %v112 = vld [vmem:[#allocation2 + $0x1b0] sm:$0xff]
    %v113 = vld [vmem:[#allocation2 + $0x1b8] sm:$0xff]
    %v114 = vld [vmem:[#allocation2 + $0x1c0] sm:$0xff]
    %v115 = vld [vmem:[#allocation2 + $0x1c8] sm:$0xff]
    %v116 = vld [vmem:[#allocation2 + $0x1d0] sm:$0xff]
    %v117 = vld [vmem:[#allocation2 + $0x1d8] sm:$0xff]
    %v118 = vld [vmem:[#allocation2 + $0x1e0] sm:$0xff]
    %v119 = vld [vmem:[#allocation2 + $0x1e8] sm:$0xff]
    %v120 = vld [vmem:[#allocation2 + $0x1f0] sm:$0xff]
    %v121 = vld [vmem:[#allocation2 + $0x1f8] sm:$0xff]
    %v122 = vld [vmem:[#allocation2 + $0x200] sm:$0xff]
    %v123 = vld [vmem:[#allocation2 + $0x208] sm:$0xff]
    %v124 = vld [vmem:[#allocation2 + $0x210] sm:$0xff]
    %v125 = vld [vmem:[#allocation2 + $0x218] sm:$0xff]
    %v126 = vld [vmem:[#allocation2 + $0x220] sm:$0xff]
    %v127 = vld [vmem:[#allocation2 + $0x228] sm:$0xff]
    %v128 = vld [vmem:[#allocation2 + $0x230] sm:$0xff]
    %v129 = vld [vmem:[#allocation2 + $0x238] sm:$0xff]
    %v130 = vld [vmem:[%s4] sm:$0xf]
    %v131 = vld [vmem:[%s0] sm:$0xff]
    %v132 = vld [vmem:[%s0 + $0x8] sm:$0xff]
    %v133 = vld [vmem:[%s0 + $0x10] sm:$0xff]
    %v134 = vld [vmem:[%s0 + $0x18] sm:$0xff]
    %v135 = vld [vmem:[%s0 + $0x20] sm:$0xff]
    %v136 = vld [vmem:[%s0 + $0x28] sm:$0xff]
    %v137 = vld [vmem:[%s0 + $0x30] sm:$0xff]
    %v138 = vld [vmem:[%s0 + $0x38] sm:$0xff]
    %v140 = vperm.slane %v130, 0
    %v141 = vperm.slane %v130, 1
    %v142 = vperm.slane %v130, 2
    %v143 = vperm.slane %v130, 3
    %vm148 = vcmask 130048
    %v150 = vsel %vm148, %v131, 0
    %v153 = vsel %vm148, %v132, 0
    %v156 = vsel %vm148, %v133, 0
    %v159 = vsel %vm148, %v134, 0
    %v162 = vsel %vm148, %v135, 0
    %v165 = vsel %vm148, %v136, 0
    %v168 = vsel %vm148, %v137, 0
    %v171 = vsel %vm148, %v138, 0
    %173 = vmatpush.msra.mxu0 0.0
    %174 = vmatpush.msra.mxu0 0.0
    %175 = vmatpush.msra.mxu0 0.0
    %176 = vmatpush.msra.mxu0 0.0
    %177 = vmatpush.msra.mxu0 0.0
    %178 = vmatpush.msra.mxu0 0.0
    %179 = vmatpush.msra.mxu0 0.0
    %180 = vmatpush.msra.mxu0 0.0
    %181 = vmatpush.msra.mxu0 0.0
    %182 = vmatpush.msra.mxu0 0.0
    %183 = vmatpush.msra.mxu0 0.0
    %184 = vmatpush.msra.mxu0 0.0
    %185 = vmatpush.msra.mxu0 0.0
    %186 = vmatpush.msra.mxu0 0.0
    %187 = vmatpush.msra.mxu0 %v62
    %188 = vmatpush.msra.mxu0 %v58
    %189 = vmatmul.f32.gmra.mxu0 %v150
    %v190 = vpop.f32.mrf.mxu0
    %v191 = vadd.f32 %v140, %v190
    %192 = vmatmul.f32.gmra.mxu0 %v153
    %v193 = vpop.f32.mrf.mxu0
    %v194 = vadd.f32 %v140, %v193
    %195 = vmatmul.f32.gmra.mxu0 %v156
    %v196 = vpop.f32.mrf.mxu0
    %v197 = vadd.f32 %v140, %v196
    %198 = vmatmul.f32.gmra.mxu0 %v159
    %v199 = vpop.f32.mrf.mxu0
    %v200 = vadd.f32 %v140, %v199
    %201 = vmatmul.f32.gmra.mxu0 %v162
    %v202 = vpop.f32.mrf.mxu0
    %v203 = vadd.f32 %v140, %v202
    %204 = vmatmul.f32.gmra.mxu0 %v165
    %v205 = vpop.f32.mrf.mxu0
    %v206 = vadd.f32 %v140, %v205
    %207 = vmatmul.f32.gmra.mxu0 %v168
    %v208 = vpop.f32.mrf.mxu0
    %v209 = vadd.f32 %v140, %v208
    %210 = vmatmul.f32.gmra.mxu0 %v171
    %v211 = vpop.f32.mrf.mxu0
    %v212 = vadd.f32 %v140, %v211
    %213 = vdwg.mxu0
    %214 = vmatpush.msra.mxu0 0.0
    %215 = vmatpush.msra.mxu0 0.0
    %216 = vmatpush.msra.mxu0 0.0
    %217 = vmatpush.msra.mxu0 0.0
    %218 = vmatpush.msra.mxu0 0.0
    %219 = vmatpush.msra.mxu0 0.0
    %220 = vmatpush.msra.mxu0 0.0
    %221 = vmatpush.msra.mxu0 0.0
    %222 = vmatpush.msra.mxu0 0.0
    %223 = vmatpush.msra.mxu0 0.0
    %224 = vmatpush.msra.mxu0 0.0
    %225 = vmatpush.msra.mxu0 0.0
    %226 = vmatpush.msra.mxu0 0.0
    %227 = vmatpush.msra.mxu0 0.0
    %228 = vmatpush.msra.mxu0 %v63
    %229 = vmatpush.msra.mxu0 %v59
    %230 = vmatmul.f32.gmra.mxu0 %v150
    %v231 = vpop.f32.mrf.mxu0
    %v232 = vadd.f32 %v141, %v231
    %233 = vmatmul.f32.gmra.mxu0 %v153
    %v234 = vpop.f32.mrf.mxu0
    %v235 = vadd.f32 %v141, %v234
    %236 = vmatmul.f32.gmra.mxu0 %v156
    %v237 = vpop.f32.mrf.mxu0
    %v238 = vadd.f32 %v141, %v237
    %239 = vmatmul.f32.gmra.mxu0 %v159
    %v240 = vpop.f32.mrf.mxu0
    %v241 = vadd.f32 %v141, %v240
    %242 = vmatmul.f32.gmra.mxu0 %v162
    %v243 = vpop.f32.mrf.mxu0
    %v244 = vadd.f32 %v141, %v243
    %245 = vmatmul.f32.gmra.mxu0 %v165
    %v246 = vpop.f32.mrf.mxu0
    %v247 = vadd.f32 %v141, %v246
    %248 = vmatmul.f32.gmra.mxu0 %v168
    %v249 = vpop.f32.mrf.mxu0
    %v250 = vadd.f32 %v141, %v249
    %251 = vmatmul.f32.gmra.mxu0 %v171
    %v252 = vpop.f32.mrf.mxu0
    %v253 = vadd.f32 %v141, %v252
    %254 = vdwg.mxu0
    %255 = vmatpush.msra.mxu0 0.0
    %256 = vmatpush.msra.mxu0 0.0
    %257 = vmatpush.msra.mxu0 0.0
    %258 = vmatpush.msra.mxu0 0.0
    %259 = vmatpush.msra.mxu0 0.0
    %260 = vmatpush.msra.mxu0 0.0
    %261 = vmatpush.msra.mxu0 0.0
    %262 = vmatpush.msra.mxu0 0.0
    %263 = vmatpush.msra.mxu0 0.0
    %264 = vmatpush.msra.mxu0 0.0
    %265 = vmatpush.msra.mxu0 0.0
    %266 = vmatpush.msra.mxu0 0.0
    %267 = vmatpush.msra.mxu0 0.0
    %268 = vmatpush.msra.mxu0 0.0
    %269 = vmatpush.msra.mxu0 %v64
    %270 = vmatpush.msra.mxu0 %v60
    %271 = vmatmul.f32.gmra.mxu0 %v150
    %v272 = vpop.f32.mrf.mxu0
    %v273 = vadd.f32 %v142, %v272
    %274 = vmatmul.f32.gmra.mxu0 %v153
    %v275 = vpop.f32.mrf.mxu0
    %v276 = vadd.f32 %v142, %v275
    %277 = vmatmul.f32.gmra.mxu0 %v156
    %v278 = vpop.f32.mrf.mxu0
    %v279 = vadd.f32 %v142, %v278
    %280 = vmatmul.f32.gmra.mxu0 %v159
    %v281 = vpop.f32.mrf.mxu0
    %v282 = vadd.f32 %v142, %v281
    %283 = vmatmul.f32.gmra.mxu0 %v162
    %v284 = vpop.f32.mrf.mxu0
    %v285 = vadd.f32 %v142, %v284
    %286 = vmatmul.f32.gmra.mxu0 %v165
    %v287 = vpop.f32.mrf.mxu0
    %v288 = vadd.f32 %v142, %v287
    %289 = vmatmul.f32.gmra.mxu0 %v168
    %v290 = vpop.f32.mrf.mxu0
    %v291 = vadd.f32 %v142, %v290
    %292 = vmatmul.f32.gmra.mxu0 %v171
    %v293 = vpop.f32.mrf.mxu0
    %v294 = vadd.f32 %v142, %v293
    %295 = vdwg.mxu0
    %296 = vmatpush.msra.mxu0 0.0
    %297 = vmatpush.msra.mxu0 0.0
    %298 = vmatpush.msra.mxu0 0.0
    %299 = vmatpush.msra.mxu0 0.0
    %300 = vmatpush.msra.mxu0 0.0
    %301 = vmatpush.msra.mxu0 0.0
    %302 = vmatpush.msra.mxu0 0.0
    %303 = vmatpush.msra.mxu0 0.0
    %304 = vmatpush.msra.mxu0 0.0
    %305 = vmatpush.msra.mxu0 0.0
    %306 = vmatpush.msra.mxu0 0.0
    %307 = vmatpush.msra.mxu0 0.0
    %308 = vmatpush.msra.mxu0 0.0
    %309 = vmatpush.msra.mxu0 0.0
    %310 = vmatpush.msra.mxu0 %v65
    %311 = vmatpush.msra.mxu0 %v61
    %312 = vmatmul.f32.gmra.mxu0 %v150
    %v313 = vpop.f32.mrf.mxu0
    %v314 = vadd.f32 %v143, %v313
    %315 = vmatmul.f32.gmra.mxu0 %v153
    %v316 = vpop.f32.mrf.mxu0
    %v317 = vadd.f32 %v143, %v316
    %318 = vmatmul.f32.gmra.mxu0 %v156
    %v319 = vpop.f32.mrf.mxu0
    %v320 = vadd.f32 %v143, %v319
    %321 = vmatmul.f32.gmra.mxu0 %v159
    %v322 = vpop.f32.mrf.mxu0
    %v323 = vadd.f32 %v143, %v322
    %324 = vmatmul.f32.gmra.mxu0 %v162
    %v325 = vpop.f32.mrf.mxu0
    %v326 = vadd.f32 %v143, %v325
    %327 = vmatmul.f32.gmra.mxu0 %v165
    %v328 = vpop.f32.mrf.mxu0
    %v329 = vadd.f32 %v143, %v328
    %330 = vmatmul.f32.gmra.mxu0 %v168
    %v331 = vpop.f32.mrf.mxu0
    %v332 = vadd.f32 %v143, %v331
    %333 = vmatmul.f32.gmra.mxu0 %v171
    %v334 = vpop.f32.mrf.mxu0
    %v335 = vadd.f32 %v143, %v334
    %336 = vdwg.mxu0
    %337 = vmatpush.msra.mxu0 %v126
    %338 = vmatpush.msra.mxu0 %v122
    %339 = vmatpush.msra.mxu0 %v118
    %340 = vmatpush.msra.mxu0 %v114
    %341 = vmatpush.msra.mxu0 %v110
    %342 = vmatpush.msra.mxu0 %v106
    %343 = vmatpush.msra.mxu0 %v102
    %344 = vmatpush.msra.mxu0 %v98
    %345 = vmatpush.msra.mxu0 %v94
    %346 = vmatpush.msra.mxu0 %v90
    %347 = vmatpush.msra.mxu0 %v86
    %348 = vmatpush.msra.mxu0 %v82
    %349 = vmatpush.msra.mxu0 %v78
    %350 = vmatpush.msra.mxu0 %v74
    %351 = vmatpush.msra.mxu0 %v70
    %352 = vmatpush.msra.mxu0 %v66
    %353 = vmatmul.f32.gmra.mxu0 %v56
    %v354 = vpop.f32.mrf.mxu0
    %v355 = vadd.f32 0.0, %v354
    %356 = vdwg.mxu0
    %357 = vmatpush.msra.mxu0 %v127
    %358 = vmatpush.msra.mxu0 %v123
    %359 = vmatpush.msra.mxu0 %v119
    %360 = vmatpush.msra.mxu0 %v115
    %361 = vmatpush.msra.mxu0 %v111
    %362 = vmatpush.msra.mxu0 %v107
    %363 = vmatpush.msra.mxu0 %v103
    %364 = vmatpush.msra.mxu0 %v99
    %365 = vmatpush.msra.mxu0 %v95
    %366 = vmatpush.msra.mxu0 %v91
    %367 = vmatpush.msra.mxu0 %v87
    %368 = vmatpush.msra.mxu0 %v83
    %369 = vmatpush.msra.mxu0 %v79
    %370 = vmatpush.msra.mxu0 %v75
    %371 = vmatpush.msra.mxu0 %v71
    %372 = vmatpush.msra.mxu0 %v67
    %373 = vmatmul.f32.gmra.mxu0 %v56
    %v374 = vpop.f32.mrf.mxu0
    %v375 = vadd.f32 0.0, %v374
    %376 = vdwg.mxu0
    %377 = vmatpush.msra.mxu0 %v128
    %378 = vmatpush.msra.mxu0 %v124
    %379 = vmatpush.msra.mxu0 %v120
    %380 = vmatpush.msra.mxu0 %v116
    %381 = vmatpush.msra.mxu0 %v112
    %382 = vmatpush.msra.mxu0 %v108
    %383 = vmatpush.msra.mxu0 %v104
    %384 = vmatpush.msra.mxu0 %v100
    %385 = vmatpush.msra.mxu0 %v96
    %386 = vmatpush.msra.mxu0 %v92
    %387 = vmatpush.msra.mxu0 %v88
    %388 = vmatpush.msra.mxu0 %v84
    %389 = vmatpush.msra.mxu0 %v80
    %390 = vmatpush.msra.mxu0 %v76
    %391 = vmatpush.msra.mxu0 %v72
    %392 = vmatpush.msra.mxu0 %v68
    %393 = vmatmul.f32.gmra.mxu0 %v56
    %v394 = vpop.f32.mrf.mxu0
    %v395 = vadd.f32 0.0, %v394
    %396 = vdwg.mxu0
    %397 = vmatpush.msra.mxu0 %v129
    %398 = vmatpush.msra.mxu0 %v125
    %399 = vmatpush.msra.mxu0 %v121
    %400 = vmatpush.msra.mxu0 %v117
    %401 = vmatpush.msra.mxu0 %v113
    %402 = vmatpush.msra.mxu0 %v109
    %403 = vmatpush.msra.mxu0 %v105
    %404 = vmatpush.msra.mxu0 %v101
    %405 = vmatpush.msra.mxu0 %v97
    %406 = vmatpush.msra.mxu0 %v93
    %407 = vmatpush.msra.mxu0 %v89
    %408 = vmatpush.msra.mxu0 %v85
    %409 = vmatpush.msra.mxu0 %v81
    %410 = vmatpush.msra.mxu0 %v77
    %411 = vmatpush.msra.mxu0 %v73
    %412 = vmatpush.msra.mxu0 %v69
    %413 = vmatmul.f32.gmra.mxu0 %v56
    %v414 = vpop.f32.mrf.mxu0
    %v415 = vadd.f32 0.0, %v414
    %416 = vdwg.mxu0
    %v417 = vadd.f32 %v191, %v355
    %v418 = vadd.f32 %v232, %v375
    %v419 = vadd.f32 %v273, %v395
    %v420 = vadd.f32 %v314, %v415
    %v421 = vmul.f32 %v417, 0.5
    %v422 = vtanh.pop %v421
    %v423 = vmul.f32 %v422, 0.5
    %v424 = vadd.f32 %v423, 0.5
    %v425 = vmul.f32 %v418, 0.5
    %v426 = vtanh.pop %v425
    %v427 = vmul.f32 %v426, 0.5
    %v428 = vadd.f32 %v427, 0.5
    %v429 = vtanh.pop %v419
    %v430 = vmul.f32 %v420, 0.5
    %v431 = vtanh.pop %v430
    %v432 = vmul.f32 %v431, 0.5
    %v433 = vadd.f32 %v432, 0.5
    %v434 = vmul.f32 %v428, %v57
    %v435 = vmul.f32 %v424, %v429
    %v436 = vadd.f32 %v434, %v435
    %v437 = vtanh.pop %v436
    %v438 = vmul.f32 %v433, %v437
    %439 = vmatpush.msra.mxu0 %v126
    %440 = vmatpush.msra.mxu0 %v122
    %441 = vmatpush.msra.mxu0 %v118
    %442 = vmatpush.msra.mxu0 %v114
    %443 = vmatpush.msra.mxu0 %v110
    %444 = vmatpush.msra.mxu0 %v106
    %445 = vmatpush.msra.mxu0 %v102
    %446 = vmatpush.msra.mxu0 %v98
    %447 = vmatpush.msra.mxu0 %v94
    %448 = vmatpush.msra.mxu0 %v90
    %449 = vmatpush.msra.mxu0 %v86
    %450 = vmatpush.msra.mxu0 %v82
    %451 = vmatpush.msra.mxu0 %v78
    %452 = vmatpush.msra.mxu0 %v74
    %453 = vmatpush.msra.mxu0 %v70
    %454 = vmatpush.msra.mxu0 %v66
    %455 = vmatmul.f32.gmra.mxu0 %v438
    %v456 = vpop.f32.mrf.mxu0
    %v457 = vadd.f32 0.0, %v456
    %458 = vdwg.mxu0
    %459 = vmatpush.msra.mxu0 %v127
    %460 = vmatpush.msra.mxu0 %v123
    %461 = vmatpush.msra.mxu0 %v119
    %462 = vmatpush.msra.mxu0 %v115
    %463 = vmatpush.msra.mxu0 %v111
    %464 = vmatpush.msra.mxu0 %v107
    %465 = vmatpush.msra.mxu0 %v103
    %466 = vmatpush.msra.mxu0 %v99
    %467 = vmatpush.msra.mxu0 %v95
    %468 = vmatpush.msra.mxu0 %v91
    %469 = vmatpush.msra.mxu0 %v87
    %470 = vmatpush.msra.mxu0 %v83
    %471 = vmatpush.msra.mxu0 %v79
    %472 = vmatpush.msra.mxu0 %v75
    %473 = vmatpush.msra.mxu0 %v71
    %474 = vmatpush.msra.mxu0 %v67
    %475 = vmatmul.f32.gmra.mxu0 %v438
    %v476 = vpop.f32.mrf.mxu0
    %v477 = vadd.f32 0.0, %v476
    %478 = vdwg.mxu0
    %479 = vmatpush.msra.mxu0 %v128
    %480 = vmatpush.msra.mxu0 %v124
    %481 = vmatpush.msra.mxu0 %v120
    %482 = vmatpush.msra.mxu0 %v116
    %483 = vmatpush.msra.mxu0 %v112
    %484 = vmatpush.msra.mxu0 %v108
    %485 = vmatpush.msra.mxu0 %v104
    %486 = vmatpush.msra.mxu0 %v100
    %487 = vmatpush.msra.mxu0 %v96
    %488 = vmatpush.msra.mxu0 %v92
    %489 = vmatpush.msra.mxu0 %v88
    %490 = vmatpush.msra.mxu0 %v84
    %491 = vmatpush.msra.mxu0 %v80
    %492 = vmatpush.msra.mxu0 %v76
    %493 = vmatpush.msra.mxu0 %v72
    %494 = vmatpush.msra.mxu0 %v68
    %495 = vmatmul.f32.gmra.mxu0 %v438
    %v496 = vpop.f32.mrf.mxu0
    %v497 = vadd.f32 0.0, %v496
    %498 = vdwg.mxu0
    %499 = vmatpush.msra.mxu0 %v129
    %500 = vmatpush.msra.mxu0 %v125
    %501 = vmatpush.msra.mxu0 %v121
    %502 = vmatpush.msra.mxu0 %v117
    %503 = vmatpush.msra.mxu0 %v113
    %504 = vmatpush.msra.mxu0 %v109
    %505 = vmatpush.msra.mxu0 %v105
    %506 = vmatpush.msra.mxu0 %v101
    %507 = vmatpush.msra.mxu0 %v97
    %508 = vmatpush.msra.mxu0 %v93
    %509 = vmatpush.msra.mxu0 %v89
    %510 = vmatpush.msra.mxu0 %v85
    %511 = vmatpush.msra.mxu0 %v81
    %512 = vmatpush.msra.mxu0 %v77
    %513 = vmatpush.msra.mxu0 %v73
    %514 = vmatpush.msra.mxu0 %v69
    %515 = vmatmul.f32.gmra.mxu0 %v438
    %v516 = vpop.f32.mrf.mxu0
    %v517 = vadd.f32 0.0, %v516
    %518 = vdwg.mxu0
    %v519 = vadd.f32 %v194, %v457
    %v520 = vadd.f32 %v235, %v477
    %v521 = vadd.f32 %v276, %v497
    %v522 = vadd.f32 %v317, %v517
    %v523 = vmul.f32 %v519, 0.5
    %v524 = vtanh.pop %v523
    %v525 = vmul.f32 %v524, 0.5
    %v526 = vadd.f32 %v525, 0.5
    %v527 = vmul.f32 %v520, 0.5
    %v528 = vtanh.pop %v527
    %v529 = vmul.f32 %v528, 0.5
    %v530 = vadd.f32 %v529, 0.5
    %v531 = vtanh.pop %v521
    %v532 = vmul.f32 %v522, 0.5
    %v533 = vtanh.pop %v532
    %v534 = vmul.f32 %v533, 0.5
    %v535 = vadd.f32 %v534, 0.5
    %v536 = vmul.f32 %v530, %v436
    %v537 = vmul.f32 %v526, %v531
    %v538 = vadd.f32 %v536, %v537
    %v539 = vtanh.pop %v538
    %v540 = vmul.f32 %v535, %v539
    %541 = vmatpush.msra.mxu0 %v126
    %542 = vmatpush.msra.mxu0 %v122
    %543 = vmatpush.msra.mxu0 %v118
    %544 = vmatpush.msra.mxu0 %v114
    %545 = vmatpush.msra.mxu0 %v110
    %546 = vmatpush.msra.mxu0 %v106
    %547 = vmatpush.msra.mxu0 %v102
    %548 = vmatpush.msra.mxu0 %v98
    %549 = vmatpush.msra.mxu0 %v94
    %550 = vmatpush.msra.mxu0 %v90
    %551 = vmatpush.msra.mxu0 %v86
    %552 = vmatpush.msra.mxu0 %v82
    %553 = vmatpush.msra.mxu0 %v78
    %554 = vmatpush.msra.mxu0 %v74
    %555 = vmatpush.msra.mxu0 %v70
    %556 = vmatpush.msra.mxu0 %v66
    %557 = vmatmul.f32.gmra.mxu0 %v540
    %v558 = vpop.f32.mrf.mxu0
    %v559 = vadd.f32 0.0, %v558
    %560 = vdwg.mxu0
    %561 = vmatpush.msra.mxu0 %v127
    %562 = vmatpush.msra.mxu0 %v123
    %563 = vmatpush.msra.mxu0 %v119
    %564 = vmatpush.msra.mxu0 %v115
    %565 = vmatpush.msra.mxu0 %v111
    %566 = vmatpush.msra.mxu0 %v107
    %567 = vmatpush.msra.mxu0 %v103
    %568 = vmatpush.msra.mxu0 %v99
    %569 = vmatpush.msra.mxu0 %v95
    %570 = vmatpush.msra.mxu0 %v91
    %571 = vmatpush.msra.mxu0 %v87
    %572 = vmatpush.msra.mxu0 %v83
    %573 = vmatpush.msra.mxu0 %v79
    %574 = vmatpush.msra.mxu0 %v75
    %575 = vmatpush.msra.mxu0 %v71
    %576 = vmatpush.msra.mxu0 %v67
    %577 = vmatmul.f32.gmra.mxu0 %v540
    %v578 = vpop.f32.mrf.mxu0
    %v579 = vadd.f32 0.0, %v578
    %580 = vdwg.mxu0
    %581 = vmatpush.msra.mxu0 %v128
    %582 = vmatpush.msra.mxu0 %v124
    %583 = vmatpush.msra.mxu0 %v120
    %584 = vmatpush.msra.mxu0 %v116
    %585 = vmatpush.msra.mxu0 %v112
    %586 = vmatpush.msra.mxu0 %v108
    %587 = vmatpush.msra.mxu0 %v104
    %588 = vmatpush.msra.mxu0 %v100
    %589 = vmatpush.msra.mxu0 %v96
    %590 = vmatpush.msra.mxu0 %v92
    %591 = vmatpush.msra.mxu0 %v88
    %592 = vmatpush.msra.mxu0 %v84
    %593 = vmatpush.msra.mxu0 %v80
    %594 = vmatpush.msra.mxu0 %v76
    %595 = vmatpush.msra.mxu0 %v72
    %596 = vmatpush.msra.mxu0 %v68
    %597 = vmatmul.f32.gmra.mxu0 %v540
    %v598 = vpop.f32.mrf.mxu0
    %v599 = vadd.f32 0.0, %v598
    %600 = vdwg.mxu0
    %601 = vmatpush.msra.mxu0 %v129
    %602 = vmatpush.msra.mxu0 %v125
    %603 = vmatpush.msra.mxu0 %v121
    %604 = vmatpush.msra.mxu0 %v117
    %605 = vmatpush.msra.mxu0 %v113
    %606 = vmatpush.msra.mxu0 %v109
    %607 = vmatpush.msra.mxu0 %v105
    %608 = vmatpush.msra.mxu0 %v101
    %609 = vmatpush.msra.mxu0 %v97
    %610 = vmatpush.msra.mxu0 %v93
    %611 = vmatpush.msra.mxu0 %v89
    %612 = vmatpush.msra.mxu0 %v85
    %613 = vmatpush.msra.mxu0 %v81
    %614 = vmatpush.msra.mxu0 %v77
    %615 = vmatpush.msra.mxu0 %v73
    %616 = vmatpush.msra.mxu0 %v69
    %617 = vmatmul.f32.gmra.mxu0 %v540
    %v618 = vpop.f32.mrf.mxu0
    %v619 = vadd.f32 0.0, %v618
    %620 = vdwg.mxu0
    %v621 = vadd.f32 %v197, %v559
    %v622 = vadd.f32 %v238, %v579
    %v623 = vadd.f32 %v279, %v599
    %v624 = vadd.f32 %v320, %v619
    %v625 = vmul.f32 %v621, 0.5
    %v626 = vtanh.pop %v625
    %v627 = vmul.f32 %v626, 0.5
    %v628 = vadd.f32 %v627, 0.5
    %v629 = vmul.f32 %v622, 0.5
    %v630 = vtanh.pop %v629
    %v631 = vmul.f32 %v630, 0.5
    %v632 = vadd.f32 %v631, 0.5
    %v633 = vtanh.pop %v623
    %v634 = vmul.f32 %v624, 0.5
    %v635 = vtanh.pop %v634
    %v636 = vmul.f32 %v635, 0.5
    %v637 = vadd.f32 %v636, 0.5
    %v638 = vmul.f32 %v632, %v538
    %v639 = vmul.f32 %v628, %v633
    %v640 = vadd.f32 %v638, %v639
    %v641 = vtanh.pop %v640
    %v642 = vmul.f32 %v637, %v641
    %643 = vmatpush.msra.mxu0 %v126
    %644 = vmatpush.msra.mxu0 %v122
    %645 = vmatpush.msra.mxu0 %v118
    %646 = vmatpush.msra.mxu0 %v114
    %647 = vmatpush.msra.mxu0 %v110
    %648 = vmatpush.msra.mxu0 %v106
    %649 = vmatpush.msra.mxu0 %v102
    %650 = vmatpush.msra.mxu0 %v98
    %651 = vmatpush.msra.mxu0 %v94
    %652 = vmatpush.msra.mxu0 %v90
    %653 = vmatpush.msra.mxu0 %v86
    %654 = vmatpush.msra.mxu0 %v82
    %655 = vmatpush.msra.mxu0 %v78
    %656 = vmatpush.msra.mxu0 %v74
    %657 = vmatpush.msra.mxu0 %v70
    %658 = vmatpush.msra.mxu0 %v66
    %659 = vmatmul.f32.gmra.mxu0 %v642
    %v660 = vpop.f32.mrf.mxu0
    %v661 = vadd.f32 0.0, %v660
    %662 = vdwg.mxu0
    %663 = vmatpush.msra.mxu0 %v127
    %664 = vmatpush.msra.mxu0 %v123
    %665 = vmatpush.msra.mxu0 %v119
    %666 = vmatpush.msra.mxu0 %v115
    %667 = vmatpush.msra.mxu0 %v111
    %668 = vmatpush.msra.mxu0 %v107
    %669 = vmatpush.msra.mxu0 %v103
    %670 = vmatpush.msra.mxu0 %v99
    %671 = vmatpush.msra.mxu0 %v95
    %672 = vmatpush.msra.mxu0 %v91
    %673 = vmatpush.msra.mxu0 %v87
    %674 = vmatpush.msra.mxu0 %v83
    %675 = vmatpush.msra.mxu0 %v79
    %676 = vmatpush.msra.mxu0 %v75
    %677 = vmatpush.msra.mxu0 %v71
    %678 = vmatpush.msra.mxu0 %v67
    %679 = vmatmul.f32.gmra.mxu0 %v642
    %v680 = vpop.f32.mrf.mxu0
    %v681 = vadd.f32 0.0, %v680
    %682 = vdwg.mxu0
    %683 = vmatpush.msra.mxu0 %v128
    %684 = vmatpush.msra.mxu0 %v124
    %685 = vmatpush.msra.mxu0 %v120
    %686 = vmatpush.msra.mxu0 %v116
    %687 = vmatpush.msra.mxu0 %v112
    %688 = vmatpush.msra.mxu0 %v108
    %689 = vmatpush.msra.mxu0 %v104
    %690 = vmatpush.msra.mxu0 %v100
    %691 = vmatpush.msra.mxu0 %v96
    %692 = vmatpush.msra.mxu0 %v92
    %693 = vmatpush.msra.mxu0 %v88
    %694 = vmatpush.msra.mxu0 %v84
    %695 = vmatpush.msra.mxu0 %v80
    %696 = vmatpush.msra.mxu0 %v76
    %697 = vmatpush.msra.mxu0 %v72
    %698 = vmatpush.msra.mxu0 %v68
    %699 = vmatmul.f32.gmra.mxu0 %v642
    %v700 = vpop.f32.mrf.mxu0
    %v701 = vadd.f32 0.0, %v700
    %702 = vdwg.mxu0
    %703 = vmatpush.msra.mxu0 %v129
    %704 = vmatpush.msra.mxu0 %v125
    %705 = vmatpush.msra.mxu0 %v121
    %706 = vmatpush.msra.mxu0 %v117
    %707 = vmatpush.msra.mxu0 %v113
    %708 = vmatpush.msra.mxu0 %v109
    %709 = vmatpush.msra.mxu0 %v105
    %710 = vmatpush.msra.mxu0 %v101
    %711 = vmatpush.msra.mxu0 %v97
    %712 = vmatpush.msra.mxu0 %v93
    %713 = vmatpush.msra.mxu0 %v89
    %714 = vmatpush.msra.mxu0 %v85
    %715 = vmatpush.msra.mxu0 %v81
    %716 = vmatpush.msra.mxu0 %v77
    %717 = vmatpush.msra.mxu0 %v73
    %718 = vmatpush.msra.mxu0 %v69
    %719 = vmatmul.f32.gmra.mxu0 %v642
    %v720 = vpop.f32.mrf.mxu0
    %v721 = vadd.f32 0.0, %v720
    %722 = vdwg.mxu0
    %v723 = vadd.f32 %v200, %v661
    %v724 = vadd.f32 %v241, %v681
    %v725 = vadd.f32 %v282, %v701
    %v726 = vadd.f32 %v323, %v721
    %v727 = vmul.f32 %v723, 0.5
    %v728 = vtanh.pop %v727
    %v729 = vmul.f32 %v728, 0.5
    %v730 = vadd.f32 %v729, 0.5
    %v731 = vmul.f32 %v724, 0.5
    %v732 = vtanh.pop %v731
    %v733 = vmul.f32 %v732, 0.5
    %v734 = vadd.f32 %v733, 0.5
    %v735 = vtanh.pop %v725
    %v736 = vmul.f32 %v726, 0.5
    %v737 = vtanh.pop %v736
    %v738 = vmul.f32 %v737, 0.5
    %v739 = vadd.f32 %v738, 0.5
    %v740 = vmul.f32 %v734, %v640
    %v741 = vmul.f32 %v730, %v735
    %v742 = vadd.f32 %v740, %v741
    %v743 = vtanh.pop %v742
    %v744 = vmul.f32 %v739, %v743
    %745 = vmatpush.msra.mxu0 %v126
    %746 = vmatpush.msra.mxu0 %v122
    %747 = vmatpush.msra.mxu0 %v118
    %748 = vmatpush.msra.mxu0 %v114
    %749 = vmatpush.msra.mxu0 %v110
    %750 = vmatpush.msra.mxu0 %v106
    %751 = vmatpush.msra.mxu0 %v102
    %752 = vmatpush.msra.mxu0 %v98
    %753 = vmatpush.msra.mxu0 %v94
    %754 = vmatpush.msra.mxu0 %v90
    %755 = vmatpush.msra.mxu0 %v86
    %756 = vmatpush.msra.mxu0 %v82
    %757 = vmatpush.msra.mxu0 %v78
    %758 = vmatpush.msra.mxu0 %v74
    %759 = vmatpush.msra.mxu0 %v70
    %760 = vmatpush.msra.mxu0 %v66
    %761 = vmatmul.f32.gmra.mxu0 %v744
    %v762 = vpop.f32.mrf.mxu0
    %v763 = vadd.f32 0.0, %v762
    %764 = vdwg.mxu0
    %765 = vmatpush.msra.mxu0 %v127
    %766 = vmatpush.msra.mxu0 %v123
    %767 = vmatpush.msra.mxu0 %v119
    %768 = vmatpush.msra.mxu0 %v115
    %769 = vmatpush.msra.mxu0 %v111
    %770 = vmatpush.msra.mxu0 %v107
    %771 = vmatpush.msra.mxu0 %v103
    %772 = vmatpush.msra.mxu0 %v99
    %773 = vmatpush.msra.mxu0 %v95
    %774 = vmatpush.msra.mxu0 %v91
    %775 = vmatpush.msra.mxu0 %v87
    %776 = vmatpush.msra.mxu0 %v83
    %777 = vmatpush.msra.mxu0 %v79
    %778 = vmatpush.msra.mxu0 %v75
    %779 = vmatpush.msra.mxu0 %v71
    %780 = vmatpush.msra.mxu0 %v67
    %781 = vmatmul.f32.gmra.mxu0 %v744
    %v782 = vpop.f32.mrf.mxu0
    %v783 = vadd.f32 0.0, %v782
    %784 = vdwg.mxu0
    %785 = vmatpush.msra.mxu0 %v128
    %786 = vmatpush.msra.mxu0 %v124
    %787 = vmatpush.msra.mxu0 %v120
    %788 = vmatpush.msra.mxu0 %v116
    %789 = vmatpush.msra.mxu0 %v112
    %790 = vmatpush.msra.mxu0 %v108
    %791 = vmatpush.msra.mxu0 %v104
    %792 = vmatpush.msra.mxu0 %v100
    %793 = vmatpush.msra.mxu0 %v96
    %794 = vmatpush.msra.mxu0 %v92
    %795 = vmatpush.msra.mxu0 %v88
    %796 = vmatpush.msra.mxu0 %v84
    %797 = vmatpush.msra.mxu0 %v80
    %798 = vmatpush.msra.mxu0 %v76
    %799 = vmatpush.msra.mxu0 %v72
    %800 = vmatpush.msra.mxu0 %v68
    %801 = vmatmul.f32.gmra.mxu0 %v744
    %v802 = vpop.f32.mrf.mxu0
    %v803 = vadd.f32 0.0, %v802
    %804 = vdwg.mxu0
    %805 = vmatpush.msra.mxu0 %v129
    %806 = vmatpush.msra.mxu0 %v125
    %807 = vmatpush.msra.mxu0 %v121
    %808 = vmatpush.msra.mxu0 %v117
    %809 = vmatpush.msra.mxu0 %v113
    %810 = vmatpush.msra.mxu0 %v109
    %811 = vmatpush.msra.mxu0 %v105
    %812 = vmatpush.msra.mxu0 %v101
    %813 = vmatpush.msra.mxu0 %v97
    %814 = vmatpush.msra.mxu0 %v93
    %815 = vmatpush.msra.mxu0 %v89
    %816 = vmatpush.msra.mxu0 %v85
    %817 = vmatpush.msra.mxu0 %v81
    %818 = vmatpush.msra.mxu0 %v77
    %819 = vmatpush.msra.mxu0 %v73
    %820 = vmatpush.msra.mxu0 %v69
    %821 = vmatmul.f32.gmra.mxu0 %v744
    %v822 = vpop.f32.mrf.mxu0
    %v823 = vadd.f32 0.0, %v822
    %824 = vdwg.mxu0
    %v825 = vadd.f32 %v203, %v763
    %v826 = vadd.f32 %v244, %v783
    %v827 = vadd.f32 %v285, %v803
    %v828 = vadd.f32 %v326, %v823
    %v829 = vmul.f32 %v825, 0.5
    %v830 = vtanh.pop %v829
    %v831 = vmul.f32 %v830, 0.5
    %v832 = vadd.f32 %v831, 0.5
    %v833 = vmul.f32 %v826, 0.5
    %v834 = vtanh.pop %v833
    %v835 = vmul.f32 %v834, 0.5
    %v836 = vadd.f32 %v835, 0.5
    %v837 = vtanh.pop %v827
    %v838 = vmul.f32 %v828, 0.5
    %v839 = vtanh.pop %v838
    %v840 = vmul.f32 %v839, 0.5
    %v841 = vadd.f32 %v840, 0.5
    %v842 = vmul.f32 %v836, %v742
    %v843 = vmul.f32 %v832, %v837
    %v844 = vadd.f32 %v842, %v843
    %v845 = vtanh.pop %v844
    %v846 = vmul.f32 %v841, %v845
    %847 = vmatpush.msra.mxu0 %v126
    %848 = vmatpush.msra.mxu0 %v122
    %849 = vmatpush.msra.mxu0 %v118
    %850 = vmatpush.msra.mxu0 %v114
    %851 = vmatpush.msra.mxu0 %v110
    %852 = vmatpush.msra.mxu0 %v106
    %853 = vmatpush.msra.mxu0 %v102
    %854 = vmatpush.msra.mxu0 %v98
    %855 = vmatpush.msra.mxu0 %v94
    %856 = vmatpush.msra.mxu0 %v90
    %857 = vmatpush.msra.mxu0 %v86
    %858 = vmatpush.msra.mxu0 %v82
    %859 = vmatpush.msra.mxu0 %v78
    %860 = vmatpush.msra.mxu0 %v74
    %861 = vmatpush.msra.mxu0 %v70
    %862 = vmatpush.msra.mxu0 %v66
    %863 = vmatmul.f32.gmra.mxu0 %v846
    %v864 = vpop.f32.mrf.mxu0
    %v865 = vadd.f32 0.0, %v864
    %866 = vdwg.mxu0
    %867 = vmatpush.msra.mxu0 %v127
    %868 = vmatpush.msra.mxu0 %v123
    %869 = vmatpush.msra.mxu0 %v119
    %870 = vmatpush.msra.mxu0 %v115
    %871 = vmatpush.msra.mxu0 %v111
    %872 = vmatpush.msra.mxu0 %v107
    %873 = vmatpush.msra.mxu0 %v103
    %874 = vmatpush.msra.mxu0 %v99
    %875 = vmatpush.msra.mxu0 %v95
    %876 = vmatpush.msra.mxu0 %v91
    %877 = vmatpush.msra.mxu0 %v87
    %878 = vmatpush.msra.mxu0 %v83
    %879 = vmatpush.msra.mxu0 %v79
    %880 = vmatpush.msra.mxu0 %v75
    %881 = vmatpush.msra.mxu0 %v71
    %882 = vmatpush.msra.mxu0 %v67
    %883 = vmatmul.f32.gmra.mxu0 %v846
    %v884 = vpop.f32.mrf.mxu0
    %v885 = vadd.f32 0.0, %v884
    %886 = vdwg.mxu0
    %887 = vmatpush.msra.mxu0 %v128
    %888 = vmatpush.msra.mxu0 %v124
    %889 = vmatpush.msra.mxu0 %v120
    %890 = vmatpush.msra.mxu0 %v116
    %891 = vmatpush.msra.mxu0 %v112
    %892 = vmatpush.msra.mxu0 %v108
    %893 = vmatpush.msra.mxu0 %v104
    %894 = vmatpush.msra.mxu0 %v100
    %895 = vmatpush.msra.mxu0 %v96
    %896 = vmatpush.msra.mxu0 %v92
    %897 = vmatpush.msra.mxu0 %v88
    %898 = vmatpush.msra.mxu0 %v84
    %899 = vmatpush.msra.mxu0 %v80
    %900 = vmatpush.msra.mxu0 %v76
    %901 = vmatpush.msra.mxu0 %v72
    %902 = vmatpush.msra.mxu0 %v68
    %903 = vmatmul.f32.gmra.mxu0 %v846
    %v904 = vpop.f32.mrf.mxu0
    %v905 = vadd.f32 0.0, %v904
    %906 = vdwg.mxu0
    %907 = vmatpush.msra.mxu0 %v129
    %908 = vmatpush.msra.mxu0 %v125
    %909 = vmatpush.msra.mxu0 %v121
    %910 = vmatpush.msra.mxu0 %v117
    %911 = vmatpush.msra.mxu0 %v113
    %912 = vmatpush.msra.mxu0 %v109
    %913 = vmatpush.msra.mxu0 %v105
    %914 = vmatpush.msra.mxu0 %v101
    %915 = vmatpush.msra.mxu0 %v97
    %916 = vmatpush.msra.mxu0 %v93
    %917 = vmatpush.msra.mxu0 %v89
    %918 = vmatpush.msra.mxu0 %v85
    %919 = vmatpush.msra.mxu0 %v81
    %920 = vmatpush.msra.mxu0 %v77
    %921 = vmatpush.msra.mxu0 %v73
    %922 = vmatpush.msra.mxu0 %v69
    %923 = vmatmul.f32.gmra.mxu0 %v846
    %v924 = vpop.f32.mrf.mxu0
    %v925 = vadd.f32 0.0, %v924
    %926 = vdwg.mxu0
    %v927 = vadd.f32 %v206, %v865
    %v928 = vadd.f32 %v247, %v885
    %v929 = vadd.f32 %v288, %v905
    %v930 = vadd.f32 %v329, %v925
    %v931 = vmul.f32 %v927, 0.5
    %v932 = vtanh.pop %v931
    %v933 = vmul.f32 %v932, 0.5
    %v934 = vadd.f32 %v933, 0.5
    %v935 = vmul.f32 %v928, 0.5
    %v936 = vtanh.pop %v935
    %v937 = vmul.f32 %v936, 0.5
    %v938 = vadd.f32 %v937, 0.5
    %v939 = vtanh.pop %v929
    %v940 = vmul.f32 %v930, 0.5
    %v941 = vtanh.pop %v940
    %v942 = vmul.f32 %v941, 0.5
    %v943 = vadd.f32 %v942, 0.5
    %v944 = vmul.f32 %v938, %v844
    %v945 = vmul.f32 %v934, %v939
    %v946 = vadd.f32 %v944, %v945
    %v947 = vtanh.pop %v946
    %v948 = vmul.f32 %v943, %v947
    %949 = vmatpush.msra.mxu0 %v126
    %950 = vmatpush.msra.mxu0 %v122
    %951 = vmatpush.msra.mxu0 %v118
    %952 = vmatpush.msra.mxu0 %v114
    %953 = vmatpush.msra.mxu0 %v110
    %954 = vmatpush.msra.mxu0 %v106
    %955 = vmatpush.msra.mxu0 %v102
    %956 = vmatpush.msra.mxu0 %v98
    %957 = vmatpush.msra.mxu0 %v94
    %958 = vmatpush.msra.mxu0 %v90
    %959 = vmatpush.msra.mxu0 %v86
    %960 = vmatpush.msra.mxu0 %v82
    %961 = vmatpush.msra.mxu0 %v78
    %962 = vmatpush.msra.mxu0 %v74
    %963 = vmatpush.msra.mxu0 %v70
    %964 = vmatpush.msra.mxu0 %v66
    %965 = vmatmul.f32.gmra.mxu0 %v948
    %v966 = vpop.f32.mrf.mxu0
    %v967 = vadd.f32 0.0, %v966
    %968 = vdwg.mxu0
    %969 = vmatpush.msra.mxu0 %v127
    %970 = vmatpush.msra.mxu0 %v123
    %971 = vmatpush.msra.mxu0 %v119
    %972 = vmatpush.msra.mxu0 %v115
    %973 = vmatpush.msra.mxu0 %v111
    %974 = vmatpush.msra.mxu0 %v107
    %975 = vmatpush.msra.mxu0 %v103
    %976 = vmatpush.msra.mxu0 %v99
    %977 = vmatpush.msra.mxu0 %v95
    %978 = vmatpush.msra.mxu0 %v91
    %979 = vmatpush.msra.mxu0 %v87
    %980 = vmatpush.msra.mxu0 %v83
    %981 = vmatpush.msra.mxu0 %v79
    %982 = vmatpush.msra.mxu0 %v75
    %983 = vmatpush.msra.mxu0 %v71
    %984 = vmatpush.msra.mxu0 %v67
    %985 = vmatmul.f32.gmra.mxu0 %v948
    %v986 = vpop.f32.mrf.mxu0
    %v987 = vadd.f32 0.0, %v986
    %988 = vdwg.mxu0
    %989 = vmatpush.msra.mxu0 %v128
    %990 = vmatpush.msra.mxu0 %v124
    %991 = vmatpush.msra.mxu0 %v120
    %992 = vmatpush.msra.mxu0 %v116
    %993 = vmatpush.msra.mxu0 %v112
    %994 = vmatpush.msra.mxu0 %v108
    %995 = vmatpush.msra.mxu0 %v104
    %996 = vmatpush.msra.mxu0 %v100
    %997 = vmatpush.msra.mxu0 %v96
    %998 = vmatpush.msra.mxu0 %v92
    %999 = vmatpush.msra.mxu0 %v88
    %1000 = vmatpush.msra.mxu0 %v84
    %1001 = vmatpush.msra.mxu0 %v80
    %1002 = vmatpush.msra.mxu0 %v76
    %1003 = vmatpush.msra.mxu0 %v72
    %1004 = vmatpush.msra.mxu0 %v68
    %1005 = vmatmul.f32.gmra.mxu0 %v948
    %v1006 = vpop.f32.mrf.mxu0
    %v1007 = vadd.f32 0.0, %v1006
    %1008 = vdwg.mxu0
    %1009 = vmatpush.msra.mxu0 %v129
    %1010 = vmatpush.msra.mxu0 %v125
    %1011 = vmatpush.msra.mxu0 %v121
    %1012 = vmatpush.msra.mxu0 %v117
    %1013 = vmatpush.msra.mxu0 %v113
    %1014 = vmatpush.msra.mxu0 %v109
    %1015 = vmatpush.msra.mxu0 %v105
    %1016 = vmatpush.msra.mxu0 %v101
    %1017 = vmatpush.msra.mxu0 %v97
    %1018 = vmatpush.msra.mxu0 %v93
    %1019 = vmatpush.msra.mxu0 %v89
    %1020 = vmatpush.msra.mxu0 %v85
    %1021 = vmatpush.msra.mxu0 %v81
    %1022 = vmatpush.msra.mxu0 %v77
    %1023 = vmatpush.msra.mxu0 %v73
    %1024 = vmatpush.msra.mxu0 %v69
    %1025 = vmatmul.f32.gmra.mxu0 %v948
    %v1026 = vpop.f32.mrf.mxu0
    %v1027 = vadd.f32 0.0, %v1026
    %1028 = vdwg.mxu0
    %v1029 = vadd.f32 %v209, %v967
    %v1030 = vadd.f32 %v250, %v987
    %v1031 = vadd.f32 %v291, %v1007
    %v1032 = vadd.f32 %v332, %v1027
    %v1033 = vmul.f32 %v1029, 0.5
    %v1034 = vtanh.pop %v1033
    %v1035 = vmul.f32 %v1034, 0.5
    %v1036 = vadd.f32 %v1035, 0.5
    %v1037 = vmul.f32 %v1030, 0.5
    %v1038 = vtanh.pop %v1037
    %v1039 = vmul.f32 %v1038, 0.5
    %v1040 = vadd.f32 %v1039, 0.5
    %v1041 = vtanh.pop %v1031
    %v1042 = vmul.f32 %v1032, 0.5
    %v1043 = vtanh.pop %v1042
    %v1044 = vmul.f32 %v1043, 0.5
    %v1045 = vadd.f32 %v1044, 0.5
    %v1046 = vmul.f32 %v1040, %v946
    %v1047 = vmul.f32 %v1036, %v1041
    %v1048 = vadd.f32 %v1046, %v1047
    %v1049 = vtanh.pop %v1048
    %v1050 = vmul.f32 %v1045, %v1049
    %1051 = vmatpush.msra.mxu0 %v126
    %1052 = vmatpush.msra.mxu0 %v122
    %1053 = vmatpush.msra.mxu0 %v118
    %1054 = vmatpush.msra.mxu0 %v114
    %1055 = vmatpush.msra.mxu0 %v110
    %1056 = vmatpush.msra.mxu0 %v106
    %1057 = vmatpush.msra.mxu0 %v102
    %1058 = vmatpush.msra.mxu0 %v98
    %1059 = vmatpush.msra.mxu0 %v94
    %1060 = vmatpush.msra.mxu0 %v90
    %1061 = vmatpush.msra.mxu0 %v86
    %1062 = vmatpush.msra.mxu0 %v82
    %1063 = vmatpush.msra.mxu0 %v78
    %1064 = vmatpush.msra.mxu0 %v74
    %1065 = vmatpush.msra.mxu0 %v70
    %1066 = vmatpush.msra.mxu0 %v66
    %1067 = vmatmul.f32.gmra.mxu0 %v1050
    %v1068 = vpop.f32.mrf.mxu0
    %v1069 = vadd.f32 0.0, %v1068
    %1070 = vdwg.mxu0
    %1071 = vmatpush.msra.mxu0 %v127
    %1072 = vmatpush.msra.mxu0 %v123
    %1073 = vmatpush.msra.mxu0 %v119
    %1074 = vmatpush.msra.mxu0 %v115
    %1075 = vmatpush.msra.mxu0 %v111
    %1076 = vmatpush.msra.mxu0 %v107
    %1077 = vmatpush.msra.mxu0 %v103
    %1078 = vmatpush.msra.mxu0 %v99
    %1079 = vmatpush.msra.mxu0 %v95
    %1080 = vmatpush.msra.mxu0 %v91
    %1081 = vmatpush.msra.mxu0 %v87
    %1082 = vmatpush.msra.mxu0 %v83
    %1083 = vmatpush.msra.mxu0 %v79
    %1084 = vmatpush.msra.mxu0 %v75
    %1085 = vmatpush.msra.mxu0 %v71
    %1086 = vmatpush.msra.mxu0 %v67
    %1087 = vmatmul.f32.gmra.mxu0 %v1050
    %v1088 = vpop.f32.mrf.mxu0
    %v1089 = vadd.f32 0.0, %v1088
    %1090 = vdwg.mxu0
    %1091 = vmatpush.msra.mxu0 %v128
    %1092 = vmatpush.msra.mxu0 %v124
    %1093 = vmatpush.msra.mxu0 %v120
    %1094 = vmatpush.msra.mxu0 %v116
    %1095 = vmatpush.msra.mxu0 %v112
    %1096 = vmatpush.msra.mxu0 %v108
    %1097 = vmatpush.msra.mxu0 %v104
    %1098 = vmatpush.msra.mxu0 %v100
    %1099 = vmatpush.msra.mxu0 %v96
    %1100 = vmatpush.msra.mxu0 %v92
    %1101 = vmatpush.msra.mxu0 %v88
    %1102 = vmatpush.msra.mxu0 %v84
    %1103 = vmatpush.msra.mxu0 %v80
    %1104 = vmatpush.msra.mxu0 %v76
    %1105 = vmatpush.msra.mxu0 %v72
    %1106 = vmatpush.msra.mxu0 %v68
    %1107 = vmatmul.f32.gmra.mxu0 %v1050
    %v1108 = vpop.f32.mrf.mxu0
    %v1109 = vadd.f32 0.0, %v1108
    %1110 = vdwg.mxu0
    %1111 = vmatpush.msra.mxu0 %v129
    %1112 = vmatpush.msra.mxu0 %v125
    %1113 = vmatpush.msra.mxu0 %v121
    %1114 = vmatpush.msra.mxu0 %v117
    %1115 = vmatpush.msra.mxu0 %v113
    %1116 = vmatpush.msra.mxu0 %v109
    %1117 = vmatpush.msra.mxu0 %v105
    %1118 = vmatpush.msra.mxu0 %v101
    %1119 = vmatpush.msra.mxu0 %v97
    %1120 = vmatpush.msra.mxu0 %v93
    %1121 = vmatpush.msra.mxu0 %v89
    %1122 = vmatpush.msra.mxu0 %v85
    %1123 = vmatpush.msra.mxu0 %v81
    %1124 = vmatpush.msra.mxu0 %v77
    %1125 = vmatpush.msra.mxu0 %v73
    %1126 = vmatpush.msra.mxu0 %v69
    %1127 = vmatmul.f32.gmra.mxu0 %v1050
    %v1128 = vpop.f32.mrf.mxu0
    %v1129 = vadd.f32 0.0, %v1128
    %1130 = vdwg.mxu0
    %v1131 = vadd.f32 %v212, %v1069
    %v1132 = vadd.f32 %v253, %v1089
    %v1133 = vadd.f32 %v294, %v1109
    %v1134 = vadd.f32 %v335, %v1129
    %v1135 = vmul.f32 %v1131, 0.5
    %v1136 = vtanh.pop %v1135
    %v1137 = vmul.f32 %v1136, 0.5
    %v1138 = vadd.f32 %v1137, 0.5
    %v1139 = vmul.f32 %v1132, 0.5
    %v1140 = vtanh.pop %v1139
    %v1141 = vmul.f32 %v1140, 0.5
    %v1142 = vadd.f32 %v1141, 0.5
    %v1143 = vtanh.pop %v1133
    %v1144 = vmul.f32 %v1134, 0.5
    %v1145 = vtanh.pop %v1144
    %v1146 = vmul.f32 %v1145, 0.5
    %v1147 = vadd.f32 %v1146, 0.5
    %v1148 = vmul.f32 %v1142, %v1048
    %v1149 = vmul.f32 %v1138, %v1143
    %v1150 = vadd.f32 %v1148, %v1149
    %v1151 = vtanh.pop %v1150
    %v1152 = vmul.f32 %v1147, %v1151
    %1153 = vst [vmem:[#allocation8] sm:$0xff] %v1152
    %1154 = vst [vmem:[#allocation8 + $0x8] sm:$0xff] %v1150
    %v1155 = vld [vmem:[%s4 + $0x4] sm:$0x1]
    %v1156 = vld [vmem:[%s4 + $0x5] sm:$0x1]
    %v1157 = vld [vmem:[#allocation5] sm:$0xff]
    %v1158 = vld [vmem:[#allocation5 + $0x10] sm:$0xff]
    %v1159 = vld [vmem:[#allocation5 + $0x20] sm:$0xff]
    %v1160 = vld [vmem:[#allocation5 + $0x30] sm:$0xff]
    %v1161 = vld [vmem:[#allocation5 + $0x40] sm:$0xff]
    %v1162 = vld [vmem:[#allocation5 + $0x50] sm:$0xff]
    %v1163 = vld [vmem:[#allocation5 + $0x60] sm:$0xff]
    %v1164 = vld [vmem:[#allocation5 + $0x70] sm:$0xff]
    %v1165 = vld [vmem:[#allocation5 + $0x80] sm:$0xff]
    %v1166 = vld [vmem:[#allocation5 + $0x90] sm:$0xff]
    %v1167 = vld [vmem:[#allocation5 + $0xa0] sm:$0xff]
    %v1168 = vld [vmem:[#allocation5 + $0xb0] sm:$0xff]
    %v1169 = vld [vmem:[#allocation5 + $0xc0] sm:$0xff]
    %v1170 = vld [vmem:[#allocation5 + $0xd0] sm:$0xff]
    %v1171 = vld [vmem:[#allocation5 + $0xe0] sm:$0xff]
    %v1172 = vld [vmem:[#allocation5 + $0xf0] sm:$0xff]
    %v1174 = vperm.slane %v1155, 0
    %1176 = vmatpush.msra.mxu0 %v1172
    %1177 = vmatpush.msra.mxu0 %v1171
    %1178 = vmatpush.msra.mxu0 %v1170
    %1179 = vmatpush.msra.mxu0 %v1169
    %1180 = vmatpush.msra.mxu0 %v1168
    %1181 = vmatpush.msra.mxu0 %v1167
    %1182 = vmatpush.msra.mxu0 %v1166
    %1183 = vmatpush.msra.mxu0 %v1165
    %1184 = vmatpush.msra.mxu0 %v1164
    %1185 = vmatpush.msra.mxu0 %v1163
    %1186 = vmatpush.msra.mxu0 %v1162
    %1187 = vmatpush.msra.mxu0 %v1161
    %1188 = vmatpush.msra.mxu0 %v1160
    %1189 = vmatpush.msra.mxu0 %v1159
    %1190 = vmatpush.msra.mxu0 %v1158
    %1191 = vmatpush.msra.mxu0 %v1157
    %1192 = vmatmul.f32.gmra.mxu0 %v1152
    %v1193 = vpop.f32.mrf.mxu0
    %v1194 = vadd.f32 %v1174, %v1193
    %1195 = vdwg.mxu0
    %v1196 = vmax.f32 %v1194, 0.0
    %v1197 = vld [vmem:[#allocation5 + $0x8] sm:$0xff]
    %v1198 = vld [vmem:[#allocation5 + $0x18] sm:$0xff]
    %v1199 = vld [vmem:[#allocation5 + $0x28] sm:$0xff]
    %v1200 = vld [vmem:[#allocation5 + $0x38] sm:$0xff]
    %v1201 = vld [vmem:[#allocation5 + $0x48] sm:$0xff]
    %v1202 = vld [vmem:[#allocation5 + $0x58] sm:$0xff]
    %v1203 = vld [vmem:[#allocation5 + $0x68] sm:$0xff]
    %v1204 = vld [vmem:[#allocation5 + $0x78] sm:$0xff]
    %v1205 = vld [vmem:[#allocation5 + $0x88] sm:$0xff]
    %v1206 = vld [vmem:[#allocation5 + $0x98] sm:$0xff]
    %v1207 = vld [vmem:[#allocation5 + $0xa8] sm:$0xff]
    %v1208 = vld [vmem:[#allocation5 + $0xb8] sm:$0xff]
    %v1209 = vld [vmem:[#allocation5 + $0xc8] sm:$0xff]
    %v1210 = vld [vmem:[#allocation5 + $0xd8] sm:$0xff]
    %v1211 = vld [vmem:[#allocation5 + $0xe8] sm:$0xff]
    %v1212 = vld [vmem:[#allocation5 + $0xf8] sm:$0xff]
    %v1214 = vperm.slane %v1156, 0
    %1216 = vmatpush.msra.mxu0 %v1212
    %1217 = vmatpush.msra.mxu0 %v1211
    %1218 = vmatpush.msra.mxu0 %v1210
    %1219 = vmatpush.msra.mxu0 %v1209
    %1220 = vmatpush.msra.mxu0 %v1208
    %1221 = vmatpush.msra.mxu0 %v1207
    %1222 = vmatpush.msra.mxu0 %v1206
    %1223 = vmatpush.msra.mxu0 %v1205
    %1224 = vmatpush.msra.mxu0 %v1204
    %1225 = vmatpush.msra.mxu0 %v1203
    %1226 = vmatpush.msra.mxu0 %v1202
    %1227 = vmatpush.msra.mxu0 %v1201
    %1228 = vmatpush.msra.mxu0 %v1200
    %1229 = vmatpush.msra.mxu0 %v1199
    %1230 = vmatpush.msra.mxu0 %v1198
    %1231 = vmatpush.msra.mxu0 %v1197
    %1232 = vmatmul.f32.gmra.mxu0 %v1196
    %v1233 = vpop.f32.mrf.mxu0
    %v1234 = vadd.f32 %v1214, %v1233
    %1235 = vdwg.mxu0
    %1236 = vst [vmem:[#allocation7] sm:$0xff] %v1234
    // Predicated region
    $region30: #{tpu_custom_call.1} parent=1 // pred_check
      _
    $region31: #{tpu_custom_call.1} parent=1 // pred_check_branch
      %1238 = sbr.rel (0) target = $region33
    $region32: #{tpu_custom_call.1} parent=1 // pred_region
      %1240 = vsyncadd [#allocation4], 0
      %s1242 = sshll.u32 [#allocation7], 4
      %s1243 = int_to_ptr.vmem [resolvable:$true] %s1242
      %s1244 = sshll.u32 %s5, 4
      %s1245 = int_to_ptr.hbm [resolvable:$true] %s1244
      %1247 = dma.vmem_to_hbm [thread:$0]  %s1243, 128, %s1245, [#allocation4]
    $region33: #{tpu_custom_call.1} parent=1 // pred_fallthru
      _
    // Predicated region
    $region34: #{tpu_custom_call.1} parent=1 // pred_check
      _
    $region35: #{tpu_custom_call.1} parent=1 // pred_check_branch
      %1249 = sbr.rel (0) target = $region37
    $region36: #{tpu_custom_call.1} parent=1 // pred_region
      %1251 = vsyncadd [#allocation9], 0
      %s1253 = sshll.u32 [#allocation8], 4
      %s1254 = int_to_ptr.vmem [resolvable:$true] %s1253
      %s1255 = sshll.u32 %s6, 4
      %s1256 = int_to_ptr.hbm [resolvable:$true] %s1255
      %1258 = dma.vmem_to_hbm [thread:$0]  %s1254, 256, %s1256, [#allocation9]
    $region37: #{tpu_custom_call.1} parent=1 // pred_fallthru
      _
    // Predicated region
    $region38: #{tpu_custom_call.1} parent=1 // pred_check
      _
    $region39: #{tpu_custom_call.1} parent=1 // pred_check_branch
      %1260 = sbr.rel (0) target = $region41
    $region40: #{tpu_custom_call.1} parent=1 // pred_region
      %1262 = dma.done [#allocation4], 128
    $region41: #{tpu_custom_call.1} parent=1 // pred_fallthru
      _
    // Predicated region
    $region42: #{tpu_custom_call.1} parent=1 // pred_check
      _
    $region43: #{tpu_custom_call.1} parent=1 // pred_check_branch
      %1264 = sbr.rel (0) target = $region45
    $region44: #{tpu_custom_call.1} parent=1 // pred_region
      %1266 = dma.done [#allocation9], 256
    $region45: #{tpu_custom_call.1} parent=1 // pred_fallthru
      _
    %1267 = vsyncpa [#allocation3], 1
    %1268 = vsyncpa [#allocation6], 1
    %1269 = vsyncpa [#allocation4], 1
    %1270 = vsyncpa [#allocation9], 1

</llo_original>
